<compile_context>
chip_gen: v6e
topology: v6e:2x2x1
jax: 0.10.0
libtpu: 0.0.40
codegen_flags: <defaults>
</compile_context>

<pallas_src>
import functools

import jax
import jax.numpy as jnp
from jax.experimental import pallas as pl
from jax.experimental.pallas import tpu as pltpu

LATENT_D = 32            # VPoser latent dimension
LATENT_PAD = 128         # lane-dense K for fc1 (zero-padded)
HIDDEN = 512             # num_neurons
NUM_JOINTS = 24 - 3      # 21 body joints decoded by VPoser
OUT_DIM = NUM_JOINTS * 6 # 126 (continuous 6D rotation per joint)
OUT_PAD = 128            # lane-dense output width (zero-padded columns)
MAX_TB = 256             # batch tile


def _round_up(x, m):
    return ((x + m - 1) // m) * m


# ----------------------------------------------------------------------------
# Pallas kernel: the 3-layer decoder MLP (the matmul hot path).
# Weights are (in_features, out_features) bf16; biases f32; f32 accumulation.
# ----------------------------------------------------------------------------
def _vposer_mlp_kernel(z_ref, w1_ref, b1_ref, w2_ref, b2_ref, w3_ref, b3_ref,
                       o_ref):
    x = z_ref[...]                                                   # (TB, 128) bf16
    h = jnp.dot(x, w1_ref[...], preferred_element_type=jnp.float32) + b1_ref[...]
    h = jnp.where(h >= 0, h, 0.2 * h)        # leaky_relu(0.2); dropout = identity (eval)
    h = h.astype(jnp.bfloat16)
    h = jnp.dot(h, w2_ref[...], preferred_element_type=jnp.float32) + b2_ref[...]
    h = jnp.where(h >= 0, h, 0.2 * h)
    h = h.astype(jnp.bfloat16)
    o_ref[...] = (jnp.dot(h, w3_ref[...], preferred_element_type=jnp.float32)
                  + b3_ref[...])                                     # (TB, 128) f32


def prepare_params(params):
    """Pad + cast the raw f32 VPoser decoder weights once, outside the hot path.

    w1: (32, 512)  -> (128, 512) bf16 (zero rows 32..127)
    w3: (512, 126) -> (512, 128) bf16 (zero cols 126..127), b3 -> (1, 128) f32
    """
    w1, b1, w2, b2, w3, b3 = params
    w1p = jnp.zeros((LATENT_PAD, HIDDEN), jnp.bfloat16).at[:LATENT_D].set(
        w1.astype(jnp.bfloat16))
    w2p = w2.astype(jnp.bfloat16)
    w3p = jnp.zeros((HIDDEN, OUT_PAD), jnp.bfloat16).at[:, :OUT_DIM].set(
        w3.astype(jnp.bfloat16))
    b3p = jnp.zeros((1, OUT_PAD), jnp.float32).at[:, :OUT_DIM].set(
        b3.astype(jnp.float32))
    return (w1p, b1.astype(jnp.float32), w2p, b2.astype(jnp.float32), w3p, b3p)


def vposer_mlp(z, prepped):
    """Decoder MLP: z (B, 32) f32 -> (B, 126) f32, batch-tiled Pallas call."""
    w1, b1, w2, b2, w3, b3 = prepped
    B = z.shape[0]

    # Pad batch to the bf16 sublane tile (16); tile it if it exceeds MAX_TB.
    Bp = _round_up(B, 16)
    if Bp <= MAX_TB:
        TB = Bp
    else:
        TB = MAX_TB
        Bp = _round_up(Bp, TB)
    grid = (Bp // TB,)

    z_p = jnp.zeros((Bp, LATENT_PAD), jnp.bfloat16).at[:B, :LATENT_D].set(
        z.astype(jnp.bfloat16))

    batch_map = lambda i: (i, 0)
    const_map = lambda i: (0, 0)   # weights/biases stay VMEM-resident across steps

    out = pl.pallas_call(
        _vposer_mlp_kernel,
        out_shape=jax.ShapeDtypeStruct((Bp, OUT_PAD), jnp.float32),
        grid=grid,
        in_specs=[
            pl.BlockSpec((TB, LATENT_PAD), batch_map),
            pl.BlockSpec((LATENT_PAD, HIDDEN), const_map),
            pl.BlockSpec((1, HIDDEN), const_map),
            pl.BlockSpec((HIDDEN, HIDDEN), const_map),
            pl.BlockSpec((1, HIDDEN), const_map),
            pl.BlockSpec((HIDDEN, OUT_PAD), const_map),
            pl.BlockSpec((1, OUT_PAD), const_map),
        ],
        out_specs=pl.BlockSpec((TB, OUT_PAD), batch_map),
        compiler_params=pltpu.CompilerParams(
            dimension_semantics=("parallel",),        # megacore-shardable on v7x
            vmem_limit_bytes=32 * 1024 * 1024,        # ~2 MB actually used; fits v5e/v6e/v7x
        ),
    )(z_p, w1, b1, w2, b2, w3, b3)
    return out[:B, :OUT_DIM]


# ----------------------------------------------------------------------------
# Plain-JAX glue: per-joint 3-vector math (ContinousRotReprDecoder + matrot2aa).
# Shapes are (B*21, 3, *) — tiny at test batch sizes; kept outside the kernel.
# TODO(synk): for very large batches, fuse this 6D->rotmat->axis-angle epilogue
# into the kernel (lane-blocked permutation of w3's columns) to avoid the extra
# HBM round trip and last-dim-3 XLA layouts.
# ----------------------------------------------------------------------------
def _normalize(v, eps=1e-12):
    n = jnp.linalg.norm(v, axis=-1, keepdims=True)
    return v / jnp.maximum(n, eps)


def rot6d_to_rotmat(x6):
    """(N, 6) continuous rotation repr -> (N, 3, 3) rotation matrices."""
    m = x6.reshape(-1, 3, 2)
    a1 = m[:, :, 0]
    a2 = m[:, :, 1]
    b1 = _normalize(a1)
    dot = jnp.sum(b1 * a2, axis=-1, keepdims=True)
    b2 = _normalize(a2 - dot * b1)
    b3 = jnp.cross(b1, b2)
    return jnp.stack([b1, b2, b3], axis=-1)   # columns are b1, b2, b3


def rotmat_to_aa(R):
    """(N, 3, 3) rotation matrices -> (N, 3) axis-angle.

    Quaternion-based, mirroring torchgeometry's rotation_matrix_to_angle_axis
    (what VPoser's matrot2aa calls) — robust near angle == pi.
    """
    eps = 1e-6
    rt = jnp.swapaxes(R, -1, -2)   # torchgeometry operates on the transpose
    r00, r01, r02 = rt[:, 0, 0], rt[:, 0, 1], rt[:, 0, 2]
    r10, r11, r12 = rt[:, 1, 0], rt[:, 1, 1], rt[:, 1, 2]
    r20, r21, r22 = rt[:, 2, 0], rt[:, 2, 1], rt[:, 2, 2]

    mask_d2 = r22 < eps
    mask_d0_d1 = r00 > r11
    mask_d0_nd1 = r00 < -r11

    t0 = 1.0 + r00 - r11 - r22
    q0 = jnp.stack([r12 - r21, t0, r01 + r10, r20 + r02], axis=-1)
    t1 = 1.0 - r00 + r11 - r22
    q1 = jnp.stack([r20 - r02, r01 + r10, t1, r12 + r21], axis=-1)
    t2 = 1.0 - r00 - r11 + r22
    q2 = jnp.stack([r01 - r10, r20 + r02, r12 + r21, t2], axis=-1)
    t3 = 1.0 + r00 + r11 + r22
    q3 = jnp.stack([t3, r12 - r21, r20 - r02, r01 - r10], axis=-1)

    c0 = mask_d2 & mask_d0_d1
    c1 = mask_d2 & (~mask_d0_d1)
    c2 = (~mask_d2) & mask_d0_nd1

    t = jnp.where(c0, t0, jnp.where(c1, t1, jnp.where(c2, t2, t3)))
    q = jnp.where(c0[:, None], q0,
        jnp.where(c1[:, None], q1,
        jnp.where(c2[:, None], q2, q3)))
    q = q * (0.5 / jnp.sqrt(jnp.maximum(t, 1e-12)))[:, None]   # (w, x, y, z)

    qw, qx, qy, qz = q[:, 0], q[:, 1], q[:, 2], q[:, 3]
    sin2 = qx * qx + qy * qy + qz * qz
    sin_t = jnp.sqrt(sin2)
    two_theta = 2.0 * jnp.where(qw < 0.0,
                                jnp.arctan2(-sin_t, -qw),
                                jnp.arctan2(sin_t, qw))
    k = jnp.where(sin2 > 0.0, two_theta / jnp.maximum(sin_t, 1e-12), 2.0)
    return jnp.stack([qx * k, qy * k, qz * k], axis=-1)


def vposer_forward(z, prepped):
    """Full Vposer.forward: z (B, 32) -> body_pose (B, 69)."""
    B = z.shape[0]
    x6 = vposer_mlp(z, prepped)                          # (B, 126)
    R = rot6d_to_rotmat(x6.reshape(-1, 6))               # (B*21, 3, 3)
    aa = rotmat_to_aa(R).reshape(B, NUM_JOINTS, 3)       # (B, 21, 3)
    zero_pose = jnp.zeros((B, 1, 3), jnp.float32)
    body_pose = jnp.concatenate([aa, zero_pose, zero_pose], axis=1)  # (B, 23, 3)
    return body_pose.reshape(B, -1)                      # (B, 69)


def init_params(key):
    """Deterministic synthetic VPoser v1 decoder weights (ckpt not loadable here)."""
    ks = jax.random.split(key, 6)
    w1 = jax.random.normal(ks[0], (LATENT_D, HIDDEN), jnp.float32) * 0.05
    b1 = jax.random.normal(ks[1], (1, HIDDEN), jnp.float32) * 0.01
    w2 = jax.random.normal(ks[2], (HIDDEN, HIDDEN), jnp.float32) * 0.05
    b2 = jax.random.normal(ks[3], (1, HIDDEN), jnp.float32) * 0.01
    w3 = jax.random.normal(ks[4], (HIDDEN, OUT_DIM), jnp.float32) * 0.05
    b3 = jax.random.normal(ks[5], (1, OUT_DIM), jnp.float32) * 0.01
    return (w1, b1, w2, b2, w3, b3)


if __name__ == "__main__":
    key = jax.random.PRNGKey(0)
    k_z, k_p, k_z2 = jax.random.split(key, 3)
    params = init_params(k_p)
    prepped = prepare_params(params)            # pad + bf16-cast once

    fwd = jax.jit(functools.partial(vposer_forward, prepped=prepped))

    # Small batch (single grid step).
    batch = 2
    z = jax.random.normal(k_z, (batch, LATENT_D), jnp.float32)
    body_pose = fwd(z)
    jax.block_until_ready(body_pose)
    assert body_pose.shape == (batch, 69), body_pose.shape
    assert body_pose.dtype == jnp.float32
    assert bool(jnp.all(jnp.isfinite(body_pose)))
    # last two joints (the appended zero joints) must be exactly zero
    assert bool(jnp.all(body_pose[:, -6:] == 0.0))

    # Larger batch exercises the tiled (grid > 1, "parallel") path.
    batch2 = 300
    z2 = jax.random.normal(k_z2, (batch2, LATENT_D), jnp.float32)
    body_pose2 = fwd(z2)
    jax.block_until_ready(body_pose2)
    assert body_pose2.shape == (batch2, 69), body_pose2.shape
    assert bool(jnp.all(jnp.isfinite(body_pose2)))
    assert bool(jnp.all(body_pose2[:, -6:] == 0.0))

    print("KERNEL_OK")
</pallas_src>

<mosaic_0001>
module attributes {stable_mosaic.version = 11 : i64} {
  func.func @_vposer_mlp_kernel(%arg0: i32, %arg1: memref<16x128xbf16, #tpu.memory_space<vmem>>, %arg2: memref<128x512xbf16, #tpu.memory_space<vmem>>, %arg3: memref<1x512xf32, #tpu.memory_space<vmem>>, %arg4: memref<512x512xbf16, #tpu.memory_space<vmem>>, %arg5: memref<1x512xf32, #tpu.memory_space<vmem>>, %arg6: memref<512x128xbf16, #tpu.memory_space<vmem>>, %arg7: memref<1x128xf32, #tpu.memory_space<vmem>>, %arg8: memref<16x128xf32, #tpu.memory_space<vmem>>) attributes {dimension_semantics = [#tpu.dimension_semantics<parallel>], iteration_bounds = array<i64: 1>, scalar_prefetch = 0 : i64, scratch_operands = 0 : i64, tpu.core_type = #tpu.core_type<tc>, window_params = [{transform_indices = @transform_0, window_bounds = array<i64: 16, 128>}, {pipeline_mode = #tpu.pipeline_mode<synchronous>, transform_indices = @transform_1, window_bounds = array<i64: 128, 512>}, {pipeline_mode = #tpu.pipeline_mode<synchronous>, transform_indices = @transform_2, window_bounds = array<i64: 1, 512>}, {pipeline_mode = #tpu.pipeline_mode<synchronous>, transform_indices = @transform_3, window_bounds = array<i64: 512, 512>}, {pipeline_mode = #tpu.pipeline_mode<synchronous>, transform_indices = @transform_4, window_bounds = array<i64: 1, 512>}, {pipeline_mode = #tpu.pipeline_mode<synchronous>, transform_indices = @transform_5, window_bounds = array<i64: 512, 128>}, {pipeline_mode = #tpu.pipeline_mode<synchronous>, transform_indices = @transform_6, window_bounds = array<i64: 1, 128>}, {transform_indices = @transform_7, window_bounds = array<i64: 16, 128>}]} {
    %c0 = arith.constant 0 : index
    %c0_0 = arith.constant 0 : index
    %0 = vector.load %arg1[%c0, %c0_0] : memref<16x128xbf16, #tpu.memory_space<vmem>>, vector<16x128xbf16>
    %c0_1 = arith.constant 0 : index
    %c0_2 = arith.constant 0 : index
    %1 = vector.load %arg2[%c0_1, %c0_2] : memref<128x512xbf16, #tpu.memory_space<vmem>>, vector<128x512xbf16>
    %cst = arith.constant dense<0.000000e+00> : vector<16x512xf32>
    %2 = tpu.matmul %0, %1, %cst {dimension_numbers = #tpu.dot_dimension_numbers<[1], [0], [0], [1], [0, 0, 1, 1], [], []>} : vector<16x128xbf16>, vector<128x512xbf16>, vector<16x512xf32> -> vector<16x512xf32>
    %c0_3 = arith.constant 0 : index
    %c0_4 = arith.constant 0 : index
    %3 = vector.load %arg3[%c0_3, %c0_4] : memref<1x512xf32, #tpu.memory_space<vmem>>, vector<1x512xf32>
    %4 = vector.broadcast %3 : vector<1x512xf32> to vector<16x512xf32>
    %5 = arith.addf %2, %4 : vector<16x512xf32>
    %cst_5 = arith.constant 0.000000e+00 : f32
    %6 = vector.broadcast %cst_5 : f32 to vector<16x512xf32>
    %7 = arith.cmpf oge, %5, %6 : vector<16x512xf32>
    %cst_6 = arith.constant 2.000000e-01 : f32
    %8 = vector.broadcast %cst_6 : f32 to vector<16x512xf32>
    %9 = arith.mulf %8, %5 : vector<16x512xf32>
    %10 = arith.select %7, %5, %9 : vector<16x512xi1>, vector<16x512xf32>
    %11 = arith.truncf %10 : vector<16x512xf32> to vector<16x512xbf16>
    %c0_7 = arith.constant 0 : index
    %c0_8 = arith.constant 0 : index
    %12 = vector.load %arg4[%c0_7, %c0_8] : memref<512x512xbf16, #tpu.memory_space<vmem>>, vector<512x512xbf16>
    %cst_9 = arith.constant dense<0.000000e+00> : vector<16x512xf32>
    %13 = tpu.matmul %11, %12, %cst_9 {dimension_numbers = #tpu.dot_dimension_numbers<[1], [0], [0], [1], [0, 0, 1, 1], [], []>} : vector<16x512xbf16>, vector<512x512xbf16>, vector<16x512xf32> -> vector<16x512xf32>
    %c0_10 = arith.constant 0 : index
    %c0_11 = arith.constant 0 : index
    %14 = vector.load %arg5[%c0_10, %c0_11] : memref<1x512xf32, #tpu.memory_space<vmem>>, vector<1x512xf32>
    %15 = vector.broadcast %14 : vector<1x512xf32> to vector<16x512xf32>
    %16 = arith.addf %13, %15 : vector<16x512xf32>
    %cst_12 = arith.constant 0.000000e+00 : f32
    %17 = vector.broadcast %cst_12 : f32 to vector<16x512xf32>
    %18 = arith.cmpf oge, %16, %17 : vector<16x512xf32>
    %cst_13 = arith.constant 2.000000e-01 : f32
    %19 = vector.broadcast %cst_13 : f32 to vector<16x512xf32>
    %20 = arith.mulf %19, %16 : vector<16x512xf32>
    %21 = arith.select %18, %16, %20 : vector<16x512xi1>, vector<16x512xf32>
    %22 = arith.truncf %21 : vector<16x512xf32> to vector<16x512xbf16>
    %c0_14 = arith.constant 0 : index
    %c0_15 = arith.constant 0 : index
    %23 = vector.load %arg6[%c0_14, %c0_15] : memref<512x128xbf16, #tpu.memory_space<vmem>>, vector<512x128xbf16>
    %cst_16 = arith.constant dense<0.000000e+00> : vector<16x128xf32>
    %24 = tpu.matmul %22, %23, %cst_16 {dimension_numbers = #tpu.dot_dimension_numbers<[1], [0], [0], [1], [0, 0, 1, 1], [], []>} : vector<16x512xbf16>, vector<512x128xbf16>, vector<16x128xf32> -> vector<16x128xf32>
    %c0_17 = arith.constant 0 : index
    %c0_18 = arith.constant 0 : index
    %25 = vector.load %arg7[%c0_17, %c0_18] : memref<1x128xf32, #tpu.memory_space<vmem>>, vector<1x128xf32>
    %26 = vector.broadcast %25 : vector<1x128xf32> to vector<16x128xf32>
    %27 = arith.addf %24, %26 : vector<16x128xf32>
    %c0_19 = arith.constant 0 : index
    %c0_20 = arith.constant 0 : index
    %28 = vector.load %arg8[%c0_19, %c0_20] : memref<16x128xf32, #tpu.memory_space<vmem>>, vector<16x128xf32>
    tpu.vector_store %arg8[%c0_19, %c0_20], %27 {strides = array<i32>} : memref<16x128xf32, #tpu.memory_space<vmem>>, vector<16x128xf32>,
    return
  }
  func.func @transform_0(%arg0: i32) -> (i32, i32) {
    %c0_i32 = arith.constant 0 : i32
    %c0_i32_0 = arith.constant 0 : i32
    return %arg0, %c0_i32 : i32, i32
  }
  func.func @transform_1(%arg0: i32) -> (i32, i32) {
    %c0_i32 = arith.constant 0 : i32
    %c0_i32_0 = arith.constant 0 : i32
    %c0_i32_1 = arith.constant 0 : i32
    return %c0_i32, %c0_i32_0 : i32, i32
  }
  func.func @transform_2(%arg0: i32) -> (i32, i32) {
    %c0_i32 = arith.constant 0 : i32
    %c0_i32_0 = arith.constant 0 : i32
    %c0_i32_1 = arith.constant 0 : i32
    return %c0_i32, %c0_i32_0 : i32, i32
  }
  func.func @transform_3(%arg0: i32) -> (i32, i32) {
    %c0_i32 = arith.constant 0 : i32
    %c0_i32_0 = arith.constant 0 : i32
    %c0_i32_1 = arith.constant 0 : i32
    return %c0_i32, %c0_i32_0 : i32, i32
  }
  func.func @transform_4(%arg0: i32) -> (i32, i32) {
    %c0_i32 = arith.constant 0 : i32
    %c0_i32_0 = arith.constant 0 : i32
    %c0_i32_1 = arith.constant 0 : i32
    return %c0_i32, %c0_i32_0 : i32, i32
  }
  func.func @transform_5(%arg0: i32) -> (i32, i32) {
    %c0_i32 = arith.constant 0 : i32
    %c0_i32_0 = arith.constant 0 : i32
    %c0_i32_1 = arith.constant 0 : i32
    return %c0_i32, %c0_i32_0 : i32, i32
  }
  func.func @transform_6(%arg0: i32) -> (i32, i32) {
    %c0_i32 = arith.constant 0 : i32
    %c0_i32_0 = arith.constant 0 : i32
    %c0_i32_1 = arith.constant 0 : i32
    return %c0_i32, %c0_i32_0 : i32, i32
  }
  func.func @transform_7(%arg0: i32) -> (i32, i32) {
    %c0_i32 = arith.constant 0 : i32
    %c0_i32_0 = arith.constant 0 : i32
    return %arg0, %c0_i32 : i32, i32
  }
}

</mosaic_0001>

<llo_original>
// kernel: vposer_forward.1
$region0: #{vposer_forward.1}
  #allocation0 [shape = 'u32[]', space=smem, size = 0x4, offset = 0x4, fixed_abs, tag = 'smem constant byte address 0x4 - core index']
  #allocation1 [shape = 'u32[144,128]{1,0:T(1,128)}', space=vmem, size = 0x12000, scoped, tag = 'internal scratch']
  %s0 = inlined_call_operand.vmem [shape: bf16[16,128], index: 0, kind: input, shape index: {}]
  %s1 = inlined_call_operand.hbm [shape: bf16[128,512], index: 1, kind: input, shape index: {}]
  %s2 = inlined_call_operand.vmem [shape: f32[1,512], index: 2, kind: input, shape index: {}]
  %s3 = inlined_call_operand.hbm [shape: bf16[512,512], index: 3, kind: input, shape index: {}]
  %s4 = inlined_call_operand.vmem [shape: f32[1,512], index: 4, kind: input, shape index: {}]
  %s5 = inlined_call_operand.hbm [shape: bf16[512,128], index: 5, kind: input, shape index: {}]
  %s6 = inlined_call_operand.vmem [shape: f32[1,128], index: 6, kind: input, shape index: {}]
  %s7 = inlined_call_operand.vmem [shape: f32[16,128], index: 7, kind: output, shape index: {}]
  %s8 = sld [smem:[#allocation0]]
  $region50: #{vposer_forward.1} parent=0
    _
  %s10 = ssub.s32 1, %s8
  %s11 = scalar_select 0, %s10, %s8
  $region1: #{vposer_forward.1} parent=0
    #allocation2 [shape = 'u8[131072]{0}', space=vmem, size = 0x20000, scoped, tag = 'input window, operand 1, single buffered']
    #allocation3 [shape = 's32[1]{0}', space=sflag, size = 0x4, scoped, tag = 'scoped memory for vposer_forward.1']
    #allocation4 [shape = 'u8[524288]{0}', space=vmem, size = 0x80000, scoped, tag = 'input window, operand 3, single buffered']
    #allocation5 [shape = 's32[1]{0}', space=sflag, size = 0x4, scoped, tag = 'scoped memory for vposer_forward.1']
    #allocation6 [shape = 'u8[131072]{0}', space=vmem, size = 0x20000, scoped, tag = 'input window, operand 5, single buffered']
    %12 = vsyncpa [#allocation3], 0
    %13 = vsyncpa [#allocation5], 0
    // Predicated region
    $region2: #{vposer_forward.1} parent=1 // pred_check
      _
    $region3: #{vposer_forward.1} parent=1 // pred_check_branch
      %15 = sbr.rel (0) target = $region5
    $region4: #{vposer_forward.1} parent=1 // pred_region
      _
    $region5: #{vposer_forward.1} parent=1 // pred_fallthru
      _
    // Predicated region
    $region6: #{vposer_forward.1} parent=1 // pred_check
      _
    $region7: #{vposer_forward.1} parent=1 // pred_check_branch
      %17 = sbr.rel (0) target = $region9
    $region8: #{vposer_forward.1} parent=1 // pred_region
      %s19 = ssub.s32 4096, 4096
      %20 = vsyncadd [#allocation3], %s19
      %s21 = sshll.u32 [#allocation2], 4
      %s22 = int_to_ptr.vmem [resolvable:$true] %s21
      %27 = dma.hbm_to_vmem [thread:$0]  %s1, 4096, %s22, [#allocation3], 256, 256, 16
    $region9: #{vposer_forward.1} parent=1 // pred_fallthru
      _
    // Predicated region
    $region10: #{vposer_forward.1} parent=1 // pred_check
      _
    $region11: #{vposer_forward.1} parent=1 // pred_check_branch
      %29 = sbr.rel (0) target = $region13
    $region12: #{vposer_forward.1} parent=1 // pred_region
      _
    $region13: #{vposer_forward.1} parent=1 // pred_fallthru
      _
    // Predicated region
    $region14: #{vposer_forward.1} parent=1 // pred_check
      _
    $region15: #{vposer_forward.1} parent=1 // pred_check_branch
      %31 = sbr.rel (0) target = $region17
    $region16: #{vposer_forward.1} parent=1 // pred_region
      %s33 = ssub.s32 16384, 16384
      %34 = vsyncadd [#allocation5], %s33
      %s35 = sshll.u32 [#allocation4], 4
      %s36 = int_to_ptr.vmem [resolvable:$true] %s35
      %41 = dma.hbm_to_vmem [thread:$0]  %s3, 16384, %s36, [#allocation5], 256, 256, 16
    $region17: #{vposer_forward.1} parent=1 // pred_fallthru
      _
    // Predicated region
    $region18: #{vposer_forward.1} parent=1 // pred_check
      _
    $region19: #{vposer_forward.1} parent=1 // pred_check_branch
      %43 = sbr.rel (0) target = $region21
    $region20: #{vposer_forward.1} parent=1 // pred_region
      _
    $region21: #{vposer_forward.1} parent=1 // pred_fallthru
      _
    // Predicated region
    $region22: #{vposer_forward.1} parent=1 // pred_check
      _
    $region23: #{vposer_forward.1} parent=1 // pred_check_branch
      %45 = sbr.rel (0) target = $region25
    $region24: #{vposer_forward.1} parent=1 // pred_region
      %s47 = ssub.s32 4096, 4096
      %48 = vsyncadd [#allocation5], %s47
      %s49 = sshll.u32 [#allocation6], 4
      %s50 = int_to_ptr.vmem [resolvable:$true] %s49
      %55 = dma.hbm_to_vmem [thread:$0]  %s5, 4096, %s50, [#allocation5], 64, 64, 4
    $region25: #{vposer_forward.1} parent=1 // pred_fallthru
      _
    // Predicated region
    $region26: #{vposer_forward.1} parent=1 // pred_check
      _
    $region27: #{vposer_forward.1} parent=1 // pred_check_branch
      %57 = sbr.rel (0) target = $region29
    $region28: #{vposer_forward.1} parent=1 // pred_region
      _
    $region29: #{vposer_forward.1} parent=1 // pred_fallthru
      _
    // Predicated region
    $region30: #{vposer_forward.1} parent=1 // pred_check
      _
    $region31: #{vposer_forward.1} parent=1 // pred_check_branch
      %59 = sbr.rel (0) target = $region33
    $region32: #{vposer_forward.1} parent=1 // pred_region
      %60 = dma.done [#allocation3], 4096
    $region33: #{vposer_forward.1} parent=1 // pred_fallthru
      _
    // Predicated region
    $region34: #{vposer_forward.1} parent=1 // pred_check
      _
    $region35: #{vposer_forward.1} parent=1 // pred_check_branch
      %62 = sbr.rel (0) target = $region37
    $region36: #{vposer_forward.1} parent=1 // pred_region
      %63 = dma.done [#allocation5], 16384
    $region37: #{vposer_forward.1} parent=1 // pred_fallthru
      _
    // Predicated region
    $region38: #{vposer_forward.1} parent=1 // pred_check
      _
    $region39: #{vposer_forward.1} parent=1 // pred_check_branch
      %65 = sbr.rel (0) target = $region41
    $region40: #{vposer_forward.1} parent=1 // pred_region
      %66 = dma.done [#allocation5], 4096
    $region41: #{vposer_forward.1} parent=1 // pred_fallthru
      _
    %v68 = vld [vmem:[%s0] sm:$0xf]
    %v69 = vld [vmem:[%s0 + $0x4] sm:$0xf]
    %v70 = vld [vmem:[#allocation2] sm:$0xff]
    %v71 = vld [vmem:[#allocation2 + $0x8] sm:$0xff]
    %v72 = vld [vmem:[#allocation2 + $0x10] sm:$0xff]
    %v73 = vld [vmem:[#allocation2 + $0x18] sm:$0xff]
    %v74 = vld [vmem:[#allocation2 + $0x20] sm:$0xff]
    %v75 = vld [vmem:[#allocation2 + $0x28] sm:$0xff]
    %v76 = vld [vmem:[#allocation2 + $0x30] sm:$0xff]
    %v77 = vld [vmem:[#allocation2 + $0x38] sm:$0xff]
    %v78 = vld [vmem:[#allocation2 + $0x40] sm:$0xff]
    %v79 = vld [vmem:[#allocation2 + $0x48] sm:$0xff]
    %v80 = vld [vmem:[#allocation2 + $0x50] sm:$0xff]
    %v81 = vld [vmem:[#allocation2 + $0x58] sm:$0xff]
    %v82 = vld [vmem:[#allocation2 + $0x60] sm:$0xff]
    %v83 = vld [vmem:[#allocation2 + $0x68] sm:$0xff]
    %v84 = vld [vmem:[#allocation2 + $0x70] sm:$0xff]
    %v85 = vld [vmem:[#allocation2 + $0x78] sm:$0xff]
    %v86 = vld [vmem:[#allocation2 + $0x80] sm:$0xff]
    %v87 = vld [vmem:[#allocation2 + $0x88] sm:$0xff]
    %v88 = vld [vmem:[#allocation2 + $0x90] sm:$0xff]
    %v89 = vld [vmem:[#allocation2 + $0x98] sm:$0xff]
    %v90 = vld [vmem:[#allocation2 + $0xa0] sm:$0xff]
    %v91 = vld [vmem:[#allocation2 + $0xa8] sm:$0xff]
    %v92 = vld [vmem:[#allocation2 + $0xb0] sm:$0xff]
    %v93 = vld [vmem:[#allocation2 + $0xb8] sm:$0xff]
    %v94 = vld [vmem:[#allocation2 + $0xc0] sm:$0xff]
    %v95 = vld [vmem:[#allocation2 + $0xc8] sm:$0xff]
    %v96 = vld [vmem:[#allocation2 + $0xd0] sm:$0xff]
    %v97 = vld [vmem:[#allocation2 + $0xd8] sm:$0xff]
    %v98 = vld [vmem:[#allocation2 + $0xe0] sm:$0xff]
    %v99 = vld [vmem:[#allocation2 + $0xe8] sm:$0xff]
    %v100 = vld [vmem:[#allocation2 + $0xf0] sm:$0xff]
    %v101 = vld [vmem:[#allocation2 + $0xf8] sm:$0xff]
    %v102 = vld [vmem:[%s2] sm:$0xf]
    %v104 = vlaneseq
    %v105 = vshrl.u32 %v104, 7
    %v106 = vsub.s32 0, %v105
    %v107 = vrot.slane %v102, %v106
    %v108 = vlaneseq
    %v109 = vshrl.u32 %v108, 7
    %v110 = vsub.s32 1, %v109
    %v111 = vrot.slane %v102, %v110
    %v112 = vlaneseq
    %v113 = vshrl.u32 %v112, 7
    %v114 = vsub.s32 2, %v113
    %v115 = vrot.slane %v102, %v114
    %v116 = vlaneseq
    %v117 = vshrl.u32 %v116, 7
    %v118 = vsub.s32 3, %v117
    %v119 = vrot.slane %v102, %v118
    %v126 = vunpack.c.l.b16 %v68
    %v127 = vunpack.c.l.b16 %v69
    %v128 = vpack.c.b16 %v127, %v126
    %v162 = vunpack.c.l.b16 %v70
    %v163 = vunpack.c.h.b16 %v70
    %v164 = vunpack.c.l.b16 %v71
    %v165 = vunpack.c.h.b16 %v71
    %v166 = vunpack.c.l.b16 %v72
    %v167 = vunpack.c.h.b16 %v72
    %v168 = vunpack.c.l.b16 %v73
    %v169 = vunpack.c.h.b16 %v73
    %v170 = vunpack.c.l.b16 %v74
    %v171 = vunpack.c.h.b16 %v74
    %v172 = vunpack.c.l.b16 %v75
    %v173 = vunpack.c.h.b16 %v75
    %v174 = vunpack.c.l.b16 %v76
    %v175 = vunpack.c.h.b16 %v76
    %v176 = vunpack.c.l.b16 %v77
    %v177 = vunpack.c.h.b16 %v77
    %v178 = vunpack.c.l.b16 %v78
    %v179 = vunpack.c.h.b16 %v78
    %v180 = vunpack.c.l.b16 %v79
    %v181 = vunpack.c.h.b16 %v79
    %v182 = vunpack.c.l.b16 %v80
    %v183 = vunpack.c.h.b16 %v80
    %v184 = vunpack.c.l.b16 %v81
    %v185 = vunpack.c.h.b16 %v81
    %v186 = vunpack.c.l.b16 %v82
    %v187 = vunpack.c.h.b16 %v82
    %v188 = vunpack.c.l.b16 %v83
    %v189 = vunpack.c.h.b16 %v83
    %v190 = vunpack.c.l.b16 %v84
    %v191 = vunpack.c.h.b16 %v84
    %v192 = vunpack.c.l.b16 %v85
    %v193 = vunpack.c.h.b16 %v85
    %v194 = vunpack.c.l.b16 %v86
    %v195 = vunpack.c.h.b16 %v86
    %v196 = vunpack.c.l.b16 %v87
    %v197 = vunpack.c.h.b16 %v87
    %v198 = vunpack.c.l.b16 %v88
    %v199 = vunpack.c.h.b16 %v88
    %v200 = vunpack.c.l.b16 %v89
    %v201 = vunpack.c.h.b16 %v89
    %v202 = vunpack.c.l.b16 %v90
    %v203 = vunpack.c.h.b16 %v90
    %v204 = vunpack.c.l.b16 %v91
    %v205 = vunpack.c.h.b16 %v91
    %v206 = vunpack.c.l.b16 %v92
    %v207 = vunpack.c.h.b16 %v92
    %v208 = vunpack.c.l.b16 %v93
    %v209 = vunpack.c.h.b16 %v93
    %v210 = vunpack.c.l.b16 %v94
    %v211 = vunpack.c.h.b16 %v94
    %v212 = vunpack.c.l.b16 %v95
    %v213 = vunpack.c.h.b16 %v95
    %v214 = vunpack.c.l.b16 %v96
    %v215 = vunpack.c.h.b16 %v96
    %v216 = vunpack.c.l.b16 %v97
    %v217 = vunpack.c.h.b16 %v97
    %v218 = vunpack.c.l.b16 %v98
    %v219 = vunpack.c.h.b16 %v98
    %v220 = vunpack.c.l.b16 %v99
    %v221 = vunpack.c.h.b16 %v99
    %v222 = vunpack.c.l.b16 %v100
    %v223 = vunpack.c.h.b16 %v100
    %v224 = vunpack.c.l.b16 %v101
    %v225 = vunpack.c.h.b16 %v101
    %v226 = vpack.c.b16 %v166, %v162
    %v227 = vpack.c.b16 %v167, %v163
    %v228 = vpack.c.b16 %v168, %v164
    %v229 = vpack.c.b16 %v169, %v165
    %v230 = vpack.c.b16 %v174, %v170
    %v231 = vpack.c.b16 %v175, %v171
    %v232 = vpack.c.b16 %v176, %v172
    %v233 = vpack.c.b16 %v177, %v173
    %v234 = vpack.c.b16 %v182, %v178
    %v235 = vpack.c.b16 %v183, %v179
    %v236 = vpack.c.b16 %v184, %v180
    %v237 = vpack.c.b16 %v185, %v181
    %v238 = vpack.c.b16 %v190, %v186
    %v239 = vpack.c.b16 %v191, %v187
    %v240 = vpack.c.b16 %v192, %v188
    %v241 = vpack.c.b16 %v193, %v189
    %v242 = vpack.c.b16 %v198, %v194
    %v243 = vpack.c.b16 %v199, %v195
    %v244 = vpack.c.b16 %v200, %v196
    %v245 = vpack.c.b16 %v201, %v197
    %v246 = vpack.c.b16 %v206, %v202
    %v247 = vpack.c.b16 %v207, %v203
    %v248 = vpack.c.b16 %v208, %v204
    %v249 = vpack.c.b16 %v209, %v205
    %v250 = vpack.c.b16 %v214, %v210
    %v251 = vpack.c.b16 %v215, %v211
    %v252 = vpack.c.b16 %v216, %v212
    %v253 = vpack.c.b16 %v217, %v213
    %v254 = vpack.c.b16 %v222, %v218
    %v255 = vpack.c.b16 %v223, %v219
    %v256 = vpack.c.b16 %v224, %v220
    %v257 = vpack.c.b16 %v225, %v221
    %290 = vmatprep.subr.bf16.mxu0 %v255
    %291 = vmatpush1.bf16.msra.mxu0 %v254
    %292 = vmatprep.subr.bf16.mxu0 %v251
    %293 = vmatpush1.bf16.msra.mxu0 %v250
    %294 = vmatprep.subr.bf16.mxu0 %v247
    %295 = vmatpush1.bf16.msra.mxu0 %v246
    %296 = vmatprep.subr.bf16.mxu0 %v243
    %297 = vmatpush1.bf16.msra.mxu0 %v242
    %298 = vmatprep.subr.bf16.mxu0 %v239
    %299 = vmatpush1.bf16.msra.mxu0 %v238
    %300 = vmatprep.subr.bf16.mxu0 %v235
    %301 = vmatpush1.bf16.msra.mxu0 %v234
    %302 = vmatprep.subr.bf16.mxu0 %v231
    %303 = vmatpush1.bf16.msra.mxu0 %v230
    %304 = vmatprep.subr.bf16.mxu0 %v227
    %305 = vmatpush1.bf16.msra.mxu0 %v226
    %306 = vmatprep.subr.bf16.mxu0 0
    %307 = vmatpush2.bf16.msra.mxu0 0
    %308 = vmatprep.subr.bf16.mxu0 0
    %309 = vmatpush2.bf16.msra.mxu0 0
    %310 = vmatprep.subr.bf16.mxu0 0
    %311 = vmatpush2.bf16.msra.mxu0 0
    %312 = vmatprep.subr.bf16.mxu0 0
    %313 = vmatpush2.bf16.msra.mxu0 0
    %314 = vmatprep.subr.bf16.mxu0 0
    %315 = vmatpush2.bf16.msra.mxu0 0
    %316 = vmatprep.subr.bf16.mxu0 0
    %317 = vmatpush2.bf16.msra.mxu0 0
    %318 = vmatprep.subr.bf16.mxu0 0
    %319 = vmatpush2.bf16.msra.mxu0 0
    %320 = vmatprep.subr.bf16.mxu0 0
    %321 = vmatpush2.bf16.msra.mxu0 0
    %322 = vmatprep.mubr.bf16.mxu0 0
    %323 = vmatmul.mubr.bf16.gmra.mxu0 %v128
    %v324 = vpop.f32.mrf.mxu0
    %v325 = vadd.f32 %v107, %v324
    %v326 = vpop.f32.mrf.mxu0
    %v327 = vadd.f32 %v111, %v326
    %v328 = vpop.f32.mrf.mxu0
    %v329 = vadd.f32 %v107, %v328
    %v330 = vpop.f32.mrf.mxu0
    %v331 = vadd.f32 %v111, %v330
    %332 = vdwg.mxu0
    %333 = vmatprep.subr.bf16.mxu0 %v257
    %334 = vmatpush1.bf16.msra.mxu0 %v256
    %335 = vmatprep.subr.bf16.mxu0 %v253
    %336 = vmatpush1.bf16.msra.mxu0 %v252
    %337 = vmatprep.subr.bf16.mxu0 %v249
    %338 = vmatpush1.bf16.msra.mxu0 %v248
    %339 = vmatprep.subr.bf16.mxu0 %v245
    %340 = vmatpush1.bf16.msra.mxu0 %v244
    %341 = vmatprep.subr.bf16.mxu0 %v241
    %342 = vmatpush1.bf16.msra.mxu0 %v240
    %343 = vmatprep.subr.bf16.mxu0 %v237
    %344 = vmatpush1.bf16.msra.mxu0 %v236
    %345 = vmatprep.subr.bf16.mxu0 %v233
    %346 = vmatpush1.bf16.msra.mxu0 %v232
    %347 = vmatprep.subr.bf16.mxu0 %v229
    %348 = vmatpush1.bf16.msra.mxu0 %v228
    %349 = vmatprep.subr.bf16.mxu0 0
    %350 = vmatpush2.bf16.msra.mxu0 0
    %351 = vmatprep.subr.bf16.mxu0 0
    %352 = vmatpush2.bf16.msra.mxu0 0
    %353 = vmatprep.subr.bf16.mxu0 0
    %354 = vmatpush2.bf16.msra.mxu0 0
    %355 = vmatprep.subr.bf16.mxu0 0
    %356 = vmatpush2.bf16.msra.mxu0 0
    %357 = vmatprep.subr.bf16.mxu0 0
    %358 = vmatpush2.bf16.msra.mxu0 0
    %359 = vmatprep.subr.bf16.mxu0 0
    %360 = vmatpush2.bf16.msra.mxu0 0
    %361 = vmatprep.subr.bf16.mxu0 0
    %362 = vmatpush2.bf16.msra.mxu0 0
    %363 = vmatprep.subr.bf16.mxu0 0
    %364 = vmatpush2.bf16.msra.mxu0 0
    %365 = vmatprep.mubr.bf16.mxu0 0
    %366 = vmatmul.mubr.bf16.gmra.mxu0 %v128
    %v367 = vpop.f32.mrf.mxu0
    %v368 = vadd.f32 %v115, %v367
    %v369 = vpop.f32.mrf.mxu0
    %v370 = vadd.f32 %v119, %v369
    %v371 = vpop.f32.mrf.mxu0
    %v372 = vadd.f32 %v115, %v371
    %v373 = vpop.f32.mrf.mxu0
    %v374 = vadd.f32 %v119, %v373
    %375 = vdwg.mxu0
    %vm376 = vcmp.ge.f32.partialorder %v325, 0.0
    %vm377 = vcmp.ge.f32.partialorder %v327, 0.0
    %vm378 = vcmp.ge.f32.partialorder %v368, 0.0
    %vm379 = vcmp.ge.f32.partialorder %v370, 0.0
    %vm380 = vcmp.ge.f32.partialorder %v329, 0.0
    %vm381 = vcmp.ge.f32.partialorder %v331, 0.0
    %vm382 = vcmp.ge.f32.partialorder %v372, 0.0
    %vm383 = vcmp.ge.f32.partialorder %v374, 0.0
    %v384 = vmul.f32 %v325, 0.2
    %v385 = vmul.f32 %v327, 0.2
    %v386 = vmul.f32 %v368, 0.2
    %v387 = vmul.f32 %v370, 0.2
    %v388 = vmul.f32 %v329, 0.2
    %v389 = vmul.f32 %v331, 0.2
    %v390 = vmul.f32 %v372, 0.2
    %v391 = vmul.f32 %v374, 0.2
    %v392 = vsel %vm376, %v325, %v384
    %v393 = vsel %vm377, %v327, %v385
    %v394 = vsel %vm378, %v368, %v386
    %v395 = vsel %vm379, %v370, %v387
    %v396 = vsel %vm380, %v329, %v388
    %v397 = vsel %vm381, %v331, %v389
    %v398 = vsel %vm382, %v372, %v390
    %v399 = vsel %vm383, %v374, %v391
    %v400 = vpack.c.bf16 %v396, %v392
    %v401 = vpack.c.bf16 %v397, %v393
    %v402 = vpack.c.bf16 %v398, %v394
    %v403 = vpack.c.bf16 %v399, %v395
    %v404 = vld [vmem:[#allocation4] sm:$0xff]
    %v405 = vld [vmem:[#allocation4 + $0x8] sm:$0xff]
    %v406 = vld [vmem:[#allocation4 + $0x10] sm:$0xff]
    %v407 = vld [vmem:[#allocation4 + $0x18] sm:$0xff]
    %v408 = vld [vmem:[#allocation4 + $0x20] sm:$0xff]
    %v409 = vld [vmem:[#allocation4 + $0x28] sm:$0xff]
    %v410 = vld [vmem:[#allocation4 + $0x30] sm:$0xff]
    %v411 = vld [vmem:[#allocation4 + $0x38] sm:$0xff]
    %v412 = vld [vmem:[#allocation4 + $0x40] sm:$0xff]
    %v413 = vld [vmem:[#allocation4 + $0x48] sm:$0xff]
    %v414 = vld [vmem:[#allocation4 + $0x50] sm:$0xff]
    %v415 = vld [vmem:[#allocation4 + $0x58] sm:$0xff]
    %v416 = vld [vmem:[#allocation4 + $0x60] sm:$0xff]
    %v417 = vld [vmem:[#allocation4 + $0x68] sm:$0xff]
    %v418 = vld [vmem:[#allocation4 + $0x70] sm:$0xff]
    %v419 = vld [vmem:[#allocation4 + $0x78] sm:$0xff]
    %v420 = vld [vmem:[#allocation4 + $0x80] sm:$0xff]
    %v421 = vld [vmem:[#allocation4 + $0x88] sm:$0xff]
    %v422 = vld [vmem:[#allocation4 + $0x90] sm:$0xff]
    %v423 = vld [vmem:[#allocation4 + $0x98] sm:$0xff]
    %v424 = vld [vmem:[#allocation4 + $0xa0] sm:$0xff]
    %v425 = vld [vmem:[#allocation4 + $0xa8] sm:$0xff]
    %v426 = vld [vmem:[#allocation4 + $0xb0] sm:$0xff]
    %v427 = vld [vmem:[#allocation4 + $0xb8] sm:$0xff]
    %v428 = vld [vmem:[#allocation4 + $0xc0] sm:$0xff]
    %v429 = vld [vmem:[#allocation4 + $0xc8] sm:$0xff]
    %v430 = vld [vmem:[#allocation4 + $0xd0] sm:$0xff]
    %v431 = vld [vmem:[#allocation4 + $0xd8] sm:$0xff]
    %v432 = vld [vmem:[#allocation4 + $0xe0] sm:$0xff]
    %v433 = vld [vmem:[#allocation4 + $0xe8] sm:$0xff]
    %v434 = vld [vmem:[#allocation4 + $0xf0] sm:$0xff]
    %v435 = vld [vmem:[#allocation4 + $0xf8] sm:$0xff]
    %v436 = vld [vmem:[#allocation4 + $0x100] sm:$0xff]
    %v437 = vld [vmem:[#allocation4 + $0x108] sm:$0xff]
    %v438 = vld [vmem:[#allocation4 + $0x110] sm:$0xff]
    %v439 = vld [vmem:[#allocation4 + $0x118] sm:$0xff]
    %v440 = vld [vmem:[#allocation4 + $0x120] sm:$0xff]
    %v441 = vld [vmem:[#allocation4 + $0x128] sm:$0xff]
    %v442 = vld [vmem:[#allocation4 + $0x130] sm:$0xff]
    %v443 = vld [vmem:[#allocation4 + $0x138] sm:$0xff]
    %v444 = vld [vmem:[#allocation4 + $0x140] sm:$0xff]
    %v445 = vld [vmem:[#allocation4 + $0x148] sm:$0xff]
    %v446 = vld [vmem:[#allocation4 + $0x150] sm:$0xff]
    %v447 = vld [vmem:[#allocation4 + $0x158] sm:$0xff]
    %v448 = vld [vmem:[#allocation4 + $0x160] sm:$0xff]
    %v449 = vld [vmem:[#allocation4 + $0x168] sm:$0xff]
    %v450 = vld [vmem:[#allocation4 + $0x170] sm:$0xff]
    %v451 = vld [vmem:[#allocation4 + $0x178] sm:$0xff]
    %v452 = vld [vmem:[#allocation4 + $0x180] sm:$0xff]
    %v453 = vld [vmem:[#allocation4 + $0x188] sm:$0xff]
    %v454 = vld [vmem:[#allocation4 + $0x190] sm:$0xff]
    %v455 = vld [vmem:[#allocation4 + $0x198] sm:$0xff]
    %v456 = vld [vmem:[#allocation4 + $0x1a0] sm:$0xff]
    %v457 = vld [vmem:[#allocation4 + $0x1a8] sm:$0xff]
    %v458 = vld [vmem:[#allocation4 + $0x1b0] sm:$0xff]
    %v459 = vld [vmem:[#allocation4 + $0x1b8] sm:$0xff]
    %v460 = vld [vmem:[#allocation4 + $0x1c0] sm:$0xff]
    %v461 = vld [vmem:[#allocation4 + $0x1c8] sm:$0xff]
    %v462 = vld [vmem:[#allocation4 + $0x1d0] sm:$0xff]
    %v463 = vld [vmem:[#allocation4 + $0x1d8] sm:$0xff]
    %v464 = vld [vmem:[#allocation4 + $0x1e0] sm:$0xff]
    %v465 = vld [vmem:[#allocation4 + $0x1e8] sm:$0xff]
    %v466 = vld [vmem:[#allocation4 + $0x1f0] sm:$0xff]
    %v467 = vld [vmem:[#allocation4 + $0x1f8] sm:$0xff]
    %v468 = vld [vmem:[#allocation4 + $0x200] sm:$0xff]
    %v469 = vld [vmem:[#allocation4 + $0x208] sm:$0xff]
    %v470 = vld [vmem:[#allocation4 + $0x210] sm:$0xff]
    %v471 = vld [vmem:[#allocation4 + $0x218] sm:$0xff]
    %v472 = vld [vmem:[#allocation4 + $0x220] sm:$0xff]
    %v473 = vld [vmem:[#allocation4 + $0x228] sm:$0xff]
    %v474 = vld [vmem:[#allocation4 + $0x230] sm:$0xff]
    %v475 = vld [vmem:[#allocation4 + $0x238] sm:$0xff]
    %v476 = vld [vmem:[#allocation4 + $0x240] sm:$0xff]
    %v477 = vld [vmem:[#allocation4 + $0x248] sm:$0xff]
    %v478 = vld [vmem:[#allocation4 + $0x250] sm:$0xff]
    %v479 = vld [vmem:[#allocation4 + $0x258] sm:$0xff]
    %v480 = vld [vmem:[#allocation4 + $0x260] sm:$0xff]
    %v481 = vld [vmem:[#allocation4 + $0x268] sm:$0xff]
    %v482 = vld [vmem:[#allocation4 + $0x270] sm:$0xff]
    %v483 = vld [vmem:[#allocation4 + $0x278] sm:$0xff]
    %v484 = vld [vmem:[#allocation4 + $0x280] sm:$0xff]
    %v485 = vld [vmem:[#allocation4 + $0x288] sm:$0xff]
    %v486 = vld [vmem:[#allocation4 + $0x290] sm:$0xff]
    %v487 = vld [vmem:[#allocation4 + $0x298] sm:$0xff]
    %v488 = vld [vmem:[#allocation4 + $0x2a0] sm:$0xff]
    %v489 = vld [vmem:[#allocation4 + $0x2a8] sm:$0xff]
    %v490 = vld [vmem:[#allocation4 + $0x2b0] sm:$0xff]
    %v491 = vld [vmem:[#allocation4 + $0x2b8] sm:$0xff]
    %v492 = vld [vmem:[#allocation4 + $0x2c0] sm:$0xff]
    %v493 = vld [vmem:[#allocation4 + $0x2c8] sm:$0xff]
    %v494 = vld [vmem:[#allocation4 + $0x2d0] sm:$0xff]
    %v495 = vld [vmem:[#allocation4 + $0x2d8] sm:$0xff]
    %v496 = vld [vmem:[#allocation4 + $0x2e0] sm:$0xff]
    %v497 = vld [vmem:[#allocation4 + $0x2e8] sm:$0xff]
    %v498 = vld [vmem:[#allocation4 + $0x2f0] sm:$0xff]
    %v499 = vld [vmem:[#allocation4 + $0x2f8] sm:$0xff]
    %v500 = vld [vmem:[#allocation4 + $0x300] sm:$0xff]
    %v501 = vld [vmem:[#allocation4 + $0x308] sm:$0xff]
    %v502 = vld [vmem:[#allocation4 + $0x310] sm:$0xff]
    %v503 = vld [vmem:[#allocation4 + $0x318] sm:$0xff]
    %v504 = vld [vmem:[#allocation4 + $0x320] sm:$0xff]
    %v505 = vld [vmem:[#allocation4 + $0x328] sm:$0xff]
    %v506 = vld [vmem:[#allocation4 + $0x330] sm:$0xff]
    %v507 = vld [vmem:[#allocation4 + $0x338] sm:$0xff]
    %v508 = vld [vmem:[#allocation4 + $0x340] sm:$0xff]
    %v509 = vld [vmem:[#allocation4 + $0x348] sm:$0xff]
    %v510 = vld [vmem:[#allocation4 + $0x350] sm:$0xff]
    %v511 = vld [vmem:[#allocation4 + $0x358] sm:$0xff]
    %v512 = vld [vmem:[#allocation4 + $0x360] sm:$0xff]
    %v513 = vld [vmem:[#allocation4 + $0x368] sm:$0xff]
    %v514 = vld [vmem:[#allocation4 + $0x370] sm:$0xff]
    %v515 = vld [vmem:[#allocation4 + $0x378] sm:$0xff]
    %v516 = vld [vmem:[#allocation4 + $0x380] sm:$0xff]
    %v517 = vld [vmem:[#allocation4 + $0x388] sm:$0xff]
    %v518 = vld [vmem:[#allocation4 + $0x390] sm:$0xff]
    %v519 = vld [vmem:[#allocation4 + $0x398] sm:$0xff]
    %v520 = vld [vmem:[#allocation4 + $0x3a0] sm:$0xff]
    %v521 = vld [vmem:[#allocation4 + $0x3a8] sm:$0xff]
    %v522 = vld [vmem:[#allocation4 + $0x3b0] sm:$0xff]
    %v523 = vld [vmem:[#allocation4 + $0x3b8] sm:$0xff]
    %v524 = vld [vmem:[#allocation4 + $0x3c0] sm:$0xff]
    %v525 = vld [vmem:[#allocation4 + $0x3c8] sm:$0xff]
    %v526 = vld [vmem:[#allocation4 + $0x3d0] sm:$0xff]
    %v527 = vld [vmem:[#allocation4 + $0x3d8] sm:$0xff]
    %v528 = vld [vmem:[#allocation4 + $0x3e0] sm:$0xff]
    %v529 = vld [vmem:[#allocation4 + $0x3e8] sm:$0xff]
    %v530 = vld [vmem:[#allocation4 + $0x3f0] sm:$0xff]
    %v531 = vld [vmem:[#allocation4 + $0x3f8] sm:$0xff]
    %v532 = vld [vmem:[%s4] sm:$0xf]
    %v534 = vlaneseq
    %v535 = vshrl.u32 %v534, 7
    %v536 = vsub.s32 0, %v535
    %v537 = vrot.slane %v532, %v536
    %v538 = vlaneseq
    %v539 = vshrl.u32 %v538, 7
    %v540 = vsub.s32 1, %v539
    %v541 = vrot.slane %v532, %v540
    %v542 = vlaneseq
    %v543 = vshrl.u32 %v542, 7
    %v544 = vsub.s32 2, %v543
    %v545 = vrot.slane %v532, %v544
    %v546 = vlaneseq
    %v547 = vshrl.u32 %v546, 7
    %v548 = vsub.s32 3, %v547
    %v549 = vrot.slane %v532, %v548
    %v682 = vunpack.c.l.b16 %v404
    %v683 = vunpack.c.h.b16 %v404
    %v684 = vunpack.c.l.b16 %v405
    %v685 = vunpack.c.h.b16 %v405
    %v686 = vunpack.c.l.b16 %v406
    %v687 = vunpack.c.h.b16 %v406
    %v688 = vunpack.c.l.b16 %v407
    %v689 = vunpack.c.h.b16 %v407
    %v690 = vunpack.c.l.b16 %v408
    %v691 = vunpack.c.h.b16 %v408
    %v692 = vunpack.c.l.b16 %v409
    %v693 = vunpack.c.h.b16 %v409
    %v694 = vunpack.c.l.b16 %v410
    %v695 = vunpack.c.h.b16 %v410
    %v696 = vunpack.c.l.b16 %v411
    %v697 = vunpack.c.h.b16 %v411
    %v698 = vunpack.c.l.b16 %v412
    %v699 = vunpack.c.h.b16 %v412
    %v700 = vunpack.c.l.b16 %v413
    %v701 = vunpack.c.h.b16 %v413
    %v702 = vunpack.c.l.b16 %v414
    %v703 = vunpack.c.h.b16 %v414
    %v704 = vunpack.c.l.b16 %v415
    %v705 = vunpack.c.h.b16 %v415
    %v706 = vunpack.c.l.b16 %v416
    %v707 = vunpack.c.h.b16 %v416
    %v708 = vunpack.c.l.b16 %v417
    %v709 = vunpack.c.h.b16 %v417
    %v710 = vunpack.c.l.b16 %v418
    %v711 = vunpack.c.h.b16 %v418
    %v712 = vunpack.c.l.b16 %v419
    %v713 = vunpack.c.h.b16 %v419
    %v714 = vunpack.c.l.b16 %v420
    %v715 = vunpack.c.h.b16 %v420
    %v716 = vunpack.c.l.b16 %v421
    %v717 = vunpack.c.h.b16 %v421
    %v718 = vunpack.c.l.b16 %v422
    %v719 = vunpack.c.h.b16 %v422
    %v720 = vunpack.c.l.b16 %v423
    %v721 = vunpack.c.h.b16 %v423
    %v722 = vunpack.c.l.b16 %v424
    %v723 = vunpack.c.h.b16 %v424
    %v724 = vunpack.c.l.b16 %v425
    %v725 = vunpack.c.h.b16 %v425
    %v726 = vunpack.c.l.b16 %v426
    %v727 = vunpack.c.h.b16 %v426
    %v728 = vunpack.c.l.b16 %v427
    %v729 = vunpack.c.h.b16 %v427
    %v730 = vunpack.c.l.b16 %v428
    %v731 = vunpack.c.h.b16 %v428
    %v732 = vunpack.c.l.b16 %v429
    %v733 = vunpack.c.h.b16 %v429
    %v734 = vunpack.c.l.b16 %v430
    %v735 = vunpack.c.h.b16 %v430
    %v736 = vunpack.c.l.b16 %v431
    %v737 = vunpack.c.h.b16 %v431
    %v738 = vunpack.c.l.b16 %v432
    %v739 = vunpack.c.h.b16 %v432
    %v740 = vunpack.c.l.b16 %v433
    %v741 = vunpack.c.h.b16 %v433
    %v742 = vunpack.c.l.b16 %v434
    %v743 = vunpack.c.h.b16 %v434
    %v744 = vunpack.c.l.b16 %v435
    %v745 = vunpack.c.h.b16 %v435
    %v746 = vunpack.c.l.b16 %v436
    %v747 = vunpack.c.h.b16 %v436
    %v748 = vunpack.c.l.b16 %v437
    %v749 = vunpack.c.h.b16 %v437
    %v750 = vunpack.c.l.b16 %v438
    %v751 = vunpack.c.h.b16 %v438
    %v752 = vunpack.c.l.b16 %v439
    %v753 = vunpack.c.h.b16 %v439
    %v754 = vunpack.c.l.b16 %v440
    %v755 = vunpack.c.h.b16 %v440
    %v756 = vunpack.c.l.b16 %v441
    %v757 = vunpack.c.h.b16 %v441
    %v758 = vunpack.c.l.b16 %v442
    %v759 = vunpack.c.h.b16 %v442
    %v760 = vunpack.c.l.b16 %v443
    %v761 = vunpack.c.h.b16 %v443
    %v762 = vunpack.c.l.b16 %v444
    %v763 = vunpack.c.h.b16 %v444
    %v764 = vunpack.c.l.b16 %v445
    %v765 = vunpack.c.h.b16 %v445
    %v766 = vunpack.c.l.b16 %v446
    %v767 = vunpack.c.h.b16 %v446
    %v768 = vunpack.c.l.b16 %v447
    %v769 = vunpack.c.h.b16 %v447
    %v770 = vunpack.c.l.b16 %v448
    %v771 = vunpack.c.h.b16 %v448
    %v772 = vunpack.c.l.b16 %v449
    %v773 = vunpack.c.h.b16 %v449
    %v774 = vunpack.c.l.b16 %v450
    %v775 = vunpack.c.h.b16 %v450
    %v776 = vunpack.c.l.b16 %v451
    %v777 = vunpack.c.h.b16 %v451
    %v778 = vunpack.c.l.b16 %v452
    %v779 = vunpack.c.h.b16 %v452
    %v780 = vunpack.c.l.b16 %v453
    %v781 = vunpack.c.h.b16 %v453
    %v782 = vunpack.c.l.b16 %v454
    %v783 = vunpack.c.h.b16 %v454
    %v784 = vunpack.c.l.b16 %v455
    %v785 = vunpack.c.h.b16 %v455
    %v786 = vunpack.c.l.b16 %v456
    %v787 = vunpack.c.h.b16 %v456
    %v788 = vunpack.c.l.b16 %v457
    %v789 = vunpack.c.h.b16 %v457
    %v790 = vunpack.c.l.b16 %v458
    %v791 = vunpack.c.h.b16 %v458
    %v792 = vunpack.c.l.b16 %v459
    %v793 = vunpack.c.h.b16 %v459
    %v794 = vunpack.c.l.b16 %v460
    %v795 = vunpack.c.h.b16 %v460
    %v796 = vunpack.c.l.b16 %v461
    %v797 = vunpack.c.h.b16 %v461
    %v798 = vunpack.c.l.b16 %v462
    %v799 = vunpack.c.h.b16 %v462
    %v800 = vunpack.c.l.b16 %v463
    %v801 = vunpack.c.h.b16 %v463
    %v802 = vunpack.c.l.b16 %v464
    %v803 = vunpack.c.h.b16 %v464
    %v804 = vunpack.c.l.b16 %v465
    %v805 = vunpack.c.h.b16 %v465
    %v806 = vunpack.c.l.b16 %v466
    %v807 = vunpack.c.h.b16 %v466
    %v808 = vunpack.c.l.b16 %v467
    %v809 = vunpack.c.h.b16 %v467
    %v810 = vunpack.c.l.b16 %v468
    %v811 = vunpack.c.h.b16 %v468
    %v812 = vunpack.c.l.b16 %v469
    %v813 = vunpack.c.h.b16 %v469
    %v814 = vunpack.c.l.b16 %v470
    %v815 = vunpack.c.h.b16 %v470
    %v816 = vunpack.c.l.b16 %v471
    %v817 = vunpack.c.h.b16 %v471
    %v818 = vunpack.c.l.b16 %v472
    %v819 = vunpack.c.h.b16 %v472
    %v820 = vunpack.c.l.b16 %v473
    %v821 = vunpack.c.h.b16 %v473
    %v822 = vunpack.c.l.b16 %v474
    %v823 = vunpack.c.h.b16 %v474
    %v824 = vunpack.c.l.b16 %v475
    %v825 = vunpack.c.h.b16 %v475
    %v826 = vunpack.c.l.b16 %v476
    %v827 = vunpack.c.h.b16 %v476
    %v828 = vunpack.c.l.b16 %v477
    %v829 = vunpack.c.h.b16 %v477
    %v830 = vunpack.c.l.b16 %v478
    %v831 = vunpack.c.h.b16 %v478
    %v832 = vunpack.c.l.b16 %v479
    %v833 = vunpack.c.h.b16 %v479
    %v834 = vunpack.c.l.b16 %v480
    %v835 = vunpack.c.h.b16 %v480
    %v836 = vunpack.c.l.b16 %v481
    %v837 = vunpack.c.h.b16 %v481
    %v838 = vunpack.c.l.b16 %v482
    %v839 = vunpack.c.h.b16 %v482
    %v840 = vunpack.c.l.b16 %v483
    %v841 = vunpack.c.h.b16 %v483
    %v842 = vunpack.c.l.b16 %v484
    %v843 = vunpack.c.h.b16 %v484
    %v844 = vunpack.c.l.b16 %v485
    %v845 = vunpack.c.h.b16 %v485
    %v846 = vunpack.c.l.b16 %v486
    %v847 = vunpack.c.h.b16 %v486
    %v848 = vunpack.c.l.b16 %v487
    %v849 = vunpack.c.h.b16 %v487
    %v850 = vunpack.c.l.b16 %v488
    %v851 = vunpack.c.h.b16 %v488
    %v852 = vunpack.c.l.b16 %v489
    %v853 = vunpack.c.h.b16 %v489
    %v854 = vunpack.c.l.b16 %v490
    %v855 = vunpack.c.h.b16 %v490
    %v856 = vunpack.c.l.b16 %v491
    %v857 = vunpack.c.h.b16 %v491
    %v858 = vunpack.c.l.b16 %v492
    %v859 = vunpack.c.h.b16 %v492
    %v860 = vunpack.c.l.b16 %v493
    %v861 = vunpack.c.h.b16 %v493
    %v862 = vunpack.c.l.b16 %v494
    %v863 = vunpack.c.h.b16 %v494
    %v864 = vunpack.c.l.b16 %v495
    %v865 = vunpack.c.h.b16 %v495
    %v866 = vunpack.c.l.b16 %v496
    %v867 = vunpack.c.h.b16 %v496
    %v868 = vunpack.c.l.b16 %v497
    %v869 = vunpack.c.h.b16 %v497
    %v870 = vunpack.c.l.b16 %v498
    %v871 = vunpack.c.h.b16 %v498
    %v872 = vunpack.c.l.b16 %v499
    %v873 = vunpack.c.h.b16 %v499
    %v874 = vunpack.c.l.b16 %v500
    %v875 = vunpack.c.h.b16 %v500
    %v876 = vunpack.c.l.b16 %v501
    %v877 = vunpack.c.h.b16 %v501
    %v878 = vunpack.c.l.b16 %v502
    %v879 = vunpack.c.h.b16 %v502
    %v880 = vunpack.c.l.b16 %v503
    %v881 = vunpack.c.h.b16 %v503
    %v882 = vunpack.c.l.b16 %v504
    %v883 = vunpack.c.h.b16 %v504
    %v884 = vunpack.c.l.b16 %v505
    %v885 = vunpack.c.h.b16 %v505
    %v886 = vunpack.c.l.b16 %v506
    %v887 = vunpack.c.h.b16 %v506
    %v888 = vunpack.c.l.b16 %v507
    %v889 = vunpack.c.h.b16 %v507
    %v890 = vunpack.c.l.b16 %v508
    %v891 = vunpack.c.h.b16 %v508
    %v892 = vunpack.c.l.b16 %v509
    %v893 = vunpack.c.h.b16 %v509
    %v894 = vunpack.c.l.b16 %v510
    %v895 = vunpack.c.h.b16 %v510
    %v896 = vunpack.c.l.b16 %v511
    %v897 = vunpack.c.h.b16 %v511
    %v898 = vunpack.c.l.b16 %v512
    %v899 = vunpack.c.h.b16 %v512
    %v900 = vunpack.c.l.b16 %v513
    %v901 = vunpack.c.h.b16 %v513
    %v902 = vunpack.c.l.b16 %v514
    %v903 = vunpack.c.h.b16 %v514
    %v904 = vunpack.c.l.b16 %v515
    %v905 = vunpack.c.h.b16 %v515
    %v906 = vunpack.c.l.b16 %v516
    %v907 = vunpack.c.h.b16 %v516
    %v908 = vunpack.c.l.b16 %v517
    %v909 = vunpack.c.h.b16 %v517
    %v910 = vunpack.c.l.b16 %v518
    %v911 = vunpack.c.h.b16 %v518
    %v912 = vunpack.c.l.b16 %v519
    %v913 = vunpack.c.h.b16 %v519
    %v914 = vunpack.c.l.b16 %v520
    %v915 = vunpack.c.h.b16 %v520
    %v916 = vunpack.c.l.b16 %v521
    %v917 = vunpack.c.h.b16 %v521
    %v918 = vunpack.c.l.b16 %v522
    %v919 = vunpack.c.h.b16 %v522
    %v920 = vunpack.c.l.b16 %v523
    %v921 = vunpack.c.h.b16 %v523
    %v922 = vunpack.c.l.b16 %v524
    %v923 = vunpack.c.h.b16 %v524
    %v924 = vunpack.c.l.b16 %v525
    %v925 = vunpack.c.h.b16 %v525
    %v926 = vunpack.c.l.b16 %v526
    %v927 = vunpack.c.h.b16 %v526
    %v928 = vunpack.c.l.b16 %v527
    %v929 = vunpack.c.h.b16 %v527
    %v930 = vunpack.c.l.b16 %v528
    %v931 = vunpack.c.h.b16 %v528
    %v932 = vunpack.c.l.b16 %v529
    %v933 = vunpack.c.h.b16 %v529
    %v934 = vunpack.c.l.b16 %v530
    %v935 = vunpack.c.h.b16 %v530
    %v936 = vunpack.c.l.b16 %v531
    %v937 = vunpack.c.h.b16 %v531
    %v938 = vpack.c.b16 %v686, %v682
    %v939 = vpack.c.b16 %v687, %v683
    %v940 = vpack.c.b16 %v688, %v684
    %v941 = vpack.c.b16 %v689, %v685
    %v942 = vpack.c.b16 %v694, %v690
    %v943 = vpack.c.b16 %v695, %v691
    %v944 = vpack.c.b16 %v696, %v692
    %v945 = vpack.c.b16 %v697, %v693
    %v946 = vpack.c.b16 %v702, %v698
    %v947 = vpack.c.b16 %v703, %v699
    %v948 = vpack.c.b16 %v704, %v700
    %v949 = vpack.c.b16 %v705, %v701
    %v950 = vpack.c.b16 %v710, %v706
    %v951 = vpack.c.b16 %v711, %v707
    %v952 = vpack.c.b16 %v712, %v708
    %v953 = vpack.c.b16 %v713, %v709
    %v954 = vpack.c.b16 %v718, %v714
    %v955 = vpack.c.b16 %v719, %v715
    %v956 = vpack.c.b16 %v720, %v716
    %v957 = vpack.c.b16 %v721, %v717
    %v958 = vpack.c.b16 %v726, %v722
    %v959 = vpack.c.b16 %v727, %v723
    %v960 = vpack.c.b16 %v728, %v724
    %v961 = vpack.c.b16 %v729, %v725
    %v962 = vpack.c.b16 %v734, %v730
    %v963 = vpack.c.b16 %v735, %v731
    %v964 = vpack.c.b16 %v736, %v732
    %v965 = vpack.c.b16 %v737, %v733
    %v966 = vpack.c.b16 %v742, %v738
    %v967 = vpack.c.b16 %v743, %v739
    %v968 = vpack.c.b16 %v744, %v740
    %v969 = vpack.c.b16 %v745, %v741
    %v970 = vpack.c.b16 %v750, %v746
    %v971 = vpack.c.b16 %v751, %v747
    %v972 = vpack.c.b16 %v752, %v748
    %v973 = vpack.c.b16 %v753, %v749
    %v974 = vpack.c.b16 %v758, %v754
    %v975 = vpack.c.b16 %v759, %v755
    %v976 = vpack.c.b16 %v760, %v756
    %v977 = vpack.c.b16 %v761, %v757
    %v978 = vpack.c.b16 %v766, %v762
    %v979 = vpack.c.b16 %v767, %v763
    %v980 = vpack.c.b16 %v768, %v764
    %v981 = vpack.c.b16 %v769, %v765
    %v982 = vpack.c.b16 %v774, %v770
    %v983 = vpack.c.b16 %v775, %v771
    %v984 = vpack.c.b16 %v776, %v772
    %v985 = vpack.c.b16 %v777, %v773
    %v986 = vpack.c.b16 %v782, %v778
    %v987 = vpack.c.b16 %v783, %v779
    %v988 = vpack.c.b16 %v784, %v780
    %v989 = vpack.c.b16 %v785, %v781
    %v990 = vpack.c.b16 %v790, %v786
    %v991 = vpack.c.b16 %v791, %v787
    %v992 = vpack.c.b16 %v792, %v788
    %v993 = vpack.c.b16 %v793, %v789
    %v994 = vpack.c.b16 %v798, %v794
    %v995 = vpack.c.b16 %v799, %v795
    %v996 = vpack.c.b16 %v800, %v796
    %v997 = vpack.c.b16 %v801, %v797
    %v998 = vpack.c.b16 %v806, %v802
    %v999 = vpack.c.b16 %v807, %v803
    %v1000 = vpack.c.b16 %v808, %v804
    %v1001 = vpack.c.b16 %v809, %v805
    %v1002 = vpack.c.b16 %v814, %v810
    %v1003 = vpack.c.b16 %v815, %v811
    %v1004 = vpack.c.b16 %v816, %v812
    %v1005 = vpack.c.b16 %v817, %v813
    %v1006 = vpack.c.b16 %v822, %v818
    %v1007 = vpack.c.b16 %v823, %v819
    %v1008 = vpack.c.b16 %v824, %v820
    %v1009 = vpack.c.b16 %v825, %v821
    %v1010 = vpack.c.b16 %v830, %v826
    %v1011 = vpack.c.b16 %v831, %v827
    %v1012 = vpack.c.b16 %v832, %v828
    %v1013 = vpack.c.b16 %v833, %v829
    %v1014 = vpack.c.b16 %v838, %v834
    %v1015 = vpack.c.b16 %v839, %v835
    %v1016 = vpack.c.b16 %v840, %v836
    %v1017 = vpack.c.b16 %v841, %v837
    %v1018 = vpack.c.b16 %v846, %v842
    %v1019 = vpack.c.b16 %v847, %v843
    %v1020 = vpack.c.b16 %v848, %v844
    %v1021 = vpack.c.b16 %v849, %v845
    %v1022 = vpack.c.b16 %v854, %v850
    %v1023 = vpack.c.b16 %v855, %v851
    %v1024 = vpack.c.b16 %v856, %v852
    %v1025 = vpack.c.b16 %v857, %v853
    %v1026 = vpack.c.b16 %v862, %v858
    %v1027 = vpack.c.b16 %v863, %v859
    %v1028 = vpack.c.b16 %v864, %v860
    %v1029 = vpack.c.b16 %v865, %v861
    %v1030 = vpack.c.b16 %v870, %v866
    %v1031 = vpack.c.b16 %v871, %v867
    %v1032 = vpack.c.b16 %v872, %v868
    %v1033 = vpack.c.b16 %v873, %v869
    %v1034 = vpack.c.b16 %v878, %v874
    %v1035 = vpack.c.b16 %v879, %v875
    %v1036 = vpack.c.b16 %v880, %v876
    %v1037 = vpack.c.b16 %v881, %v877
    %v1038 = vpack.c.b16 %v886, %v882
    %v1039 = vpack.c.b16 %v887, %v883
    %v1040 = vpack.c.b16 %v888, %v884
    %v1041 = vpack.c.b16 %v889, %v885
    %v1042 = vpack.c.b16 %v894, %v890
    %v1043 = vpack.c.b16 %v895, %v891
    %v1044 = vpack.c.b16 %v896, %v892
    %v1045 = vpack.c.b16 %v897, %v893
    %v1046 = vpack.c.b16 %v902, %v898
    %v1047 = vpack.c.b16 %v903, %v899
    %v1048 = vpack.c.b16 %v904, %v900
    %v1049 = vpack.c.b16 %v905, %v901
    %v1050 = vpack.c.b16 %v910, %v906
    %v1051 = vpack.c.b16 %v911, %v907
    %v1052 = vpack.c.b16 %v912, %v908
    %v1053 = vpack.c.b16 %v913, %v909
    %v1054 = vpack.c.b16 %v918, %v914
    %v1055 = vpack.c.b16 %v919, %v915
    %v1056 = vpack.c.b16 %v920, %v916
    %v1057 = vpack.c.b16 %v921, %v917
    %v1058 = vpack.c.b16 %v926, %v922
    %v1059 = vpack.c.b16 %v927, %v923
    %v1060 = vpack.c.b16 %v928, %v924
    %v1061 = vpack.c.b16 %v929, %v925
    %v1062 = vpack.c.b16 %v934, %v930
    %v1063 = vpack.c.b16 %v935, %v931
    %v1064 = vpack.c.b16 %v936, %v932
    %v1065 = vpack.c.b16 %v937, %v933
    %1194 = vmatprep.subr.bf16.mxu0 %v967
    %1195 = vmatpush1.bf16.msra.mxu0 %v966
    %1196 = vmatprep.subr.bf16.mxu0 %v963
    %1197 = vmatpush1.bf16.msra.mxu0 %v962
    %1198 = vmatprep.subr.bf16.mxu0 %v959
    %1199 = vmatpush1.bf16.msra.mxu0 %v958
    %1200 = vmatprep.subr.bf16.mxu0 %v955
    %1201 = vmatpush1.bf16.msra.mxu0 %v954
    %1202 = vmatprep.subr.bf16.mxu0 %v951
    %1203 = vmatpush1.bf16.msra.mxu0 %v950
    %1204 = vmatprep.subr.bf16.mxu0 %v947
    %1205 = vmatpush1.bf16.msra.mxu0 %v946
    %1206 = vmatprep.subr.bf16.mxu0 %v943
    %1207 = vmatpush1.bf16.msra.mxu0 %v942
    %1208 = vmatprep.subr.bf16.mxu0 %v939
    %1209 = vmatpush1.bf16.msra.mxu0 %v938
    %1210 = vmatprep.subr.bf16.mxu0 %v999
    %1211 = vmatpush2.bf16.msra.mxu0 %v998
    %1212 = vmatprep.subr.bf16.mxu0 %v995
    %1213 = vmatpush2.bf16.msra.mxu0 %v994
    %1214 = vmatprep.subr.bf16.mxu0 %v991
    %1215 = vmatpush2.bf16.msra.mxu0 %v990
    %1216 = vmatprep.subr.bf16.mxu0 %v987
    %1217 = vmatpush2.bf16.msra.mxu0 %v986
    %1218 = vmatprep.subr.bf16.mxu0 %v983
    %1219 = vmatpush2.bf16.msra.mxu0 %v982
    %1220 = vmatprep.subr.bf16.mxu0 %v979
    %1221 = vmatpush2.bf16.msra.mxu0 %v978
    %1222 = vmatprep.subr.bf16.mxu0 %v975
    %1223 = vmatpush2.bf16.msra.mxu0 %v974
    %1224 = vmatprep.subr.bf16.mxu0 %v971
    %1225 = vmatpush2.bf16.msra.mxu0 %v970
    %1226 = vmatprep.mubr.bf16.mxu0 %v401
    %1227 = vmatmul.mubr.bf16.gmra.mxu0 %v400
    %v1228 = vpop.f32.mrf.mxu0
    %v1229 = vadd.f32 %v537, %v1228
    %v1230 = vpop.f32.mrf.mxu0
    %v1231 = vadd.f32 %v541, %v1230
    %v1232 = vpop.f32.mrf.mxu0
    %v1233 = vadd.f32 %v537, %v1232
    %v1234 = vpop.f32.mrf.mxu0
    %v1235 = vadd.f32 %v541, %v1234
    %1236 = vdwg.mxu0
    %1237 = vmatprep.subr.bf16.mxu0 %v1031
    %1238 = vmatpush1.bf16.msra.mxu0 %v1030
    %1239 = vmatprep.subr.bf16.mxu0 %v1027
    %1240 = vmatpush1.bf16.msra.mxu0 %v1026
    %1241 = vmatprep.subr.bf16.mxu0 %v1023
    %1242 = vmatpush1.bf16.msra.mxu0 %v1022
    %1243 = vmatprep.subr.bf16.mxu0 %v1019
    %1244 = vmatpush1.bf16.msra.mxu0 %v1018
    %1245 = vmatprep.subr.bf16.mxu0 %v1015
    %1246 = vmatpush1.bf16.msra.mxu0 %v1014
    %1247 = vmatprep.subr.bf16.mxu0 %v1011
    %1248 = vmatpush1.bf16.msra.mxu0 %v1010
    %1249 = vmatprep.subr.bf16.mxu0 %v1007
    %1250 = vmatpush1.bf16.msra.mxu0 %v1006
    %1251 = vmatprep.subr.bf16.mxu0 %v1003
    %1252 = vmatpush1.bf16.msra.mxu0 %v1002
    %1253 = vmatprep.subr.bf16.mxu0 %v1063
    %1254 = vmatpush2.bf16.msra.mxu0 %v1062
    %1255 = vmatprep.subr.bf16.mxu0 %v1059
    %1256 = vmatpush2.bf16.msra.mxu0 %v1058
    %1257 = vmatprep.subr.bf16.mxu0 %v1055
    %1258 = vmatpush2.bf16.msra.mxu0 %v1054
    %1259 = vmatprep.subr.bf16.mxu0 %v1051
    %1260 = vmatpush2.bf16.msra.mxu0 %v1050
    %1261 = vmatprep.subr.bf16.mxu0 %v1047
    %1262 = vmatpush2.bf16.msra.mxu0 %v1046
    %1263 = vmatprep.subr.bf16.mxu0 %v1043
    %1264 = vmatpush2.bf16.msra.mxu0 %v1042
    %1265 = vmatprep.subr.bf16.mxu0 %v1039
    %1266 = vmatpush2.bf16.msra.mxu0 %v1038
    %1267 = vmatprep.subr.bf16.mxu0 %v1035
    %1268 = vmatpush2.bf16.msra.mxu0 %v1034
    %1269 = vmatprep.mubr.bf16.mxu0 %v403
    %1270 = vmatmul.mubr.bf16.gmra.mxu0 %v402
    %v1271 = vpop.f32.mrf.mxu0
    %v1272 = vadd.f32 %v1229, %v1271
    %v1273 = vpop.f32.mrf.mxu0
    %v1274 = vadd.f32 %v1231, %v1273
    %v1275 = vpop.f32.mrf.mxu0
    %v1276 = vadd.f32 %v1233, %v1275
    %v1277 = vpop.f32.mrf.mxu0
    %v1278 = vadd.f32 %v1235, %v1277
    %1279 = vdwg.mxu0
    %1280 = vmatprep.subr.bf16.mxu0 %v969
    %1281 = vmatpush1.bf16.msra.mxu0 %v968
    %1282 = vmatprep.subr.bf16.mxu0 %v965
    %1283 = vmatpush1.bf16.msra.mxu0 %v964
    %1284 = vmatprep.subr.bf16.mxu0 %v961
    %1285 = vmatpush1.bf16.msra.mxu0 %v960
    %1286 = vmatprep.subr.bf16.mxu0 %v957
    %1287 = vmatpush1.bf16.msra.mxu0 %v956
    %1288 = vmatprep.subr.bf16.mxu0 %v953
    %1289 = vmatpush1.bf16.msra.mxu0 %v952
    %1290 = vmatprep.subr.bf16.mxu0 %v949
    %1291 = vmatpush1.bf16.msra.mxu0 %v948
    %1292 = vmatprep.subr.bf16.mxu0 %v945
    %1293 = vmatpush1.bf16.msra.mxu0 %v944
    %1294 = vmatprep.subr.bf16.mxu0 %v941
    %1295 = vmatpush1.bf16.msra.mxu0 %v940
    %1296 = vmatprep.subr.bf16.mxu0 %v1001
    %1297 = vmatpush2.bf16.msra.mxu0 %v1000
    %1298 = vmatprep.subr.bf16.mxu0 %v997
    %1299 = vmatpush2.bf16.msra.mxu0 %v996
    %1300 = vmatprep.subr.bf16.mxu0 %v993
    %1301 = vmatpush2.bf16.msra.mxu0 %v992
    %1302 = vmatprep.subr.bf16.mxu0 %v989
    %1303 = vmatpush2.bf16.msra.mxu0 %v988
    %1304 = vmatprep.subr.bf16.mxu0 %v985
    %1305 = vmatpush2.bf16.msra.mxu0 %v984
    %1306 = vmatprep.subr.bf16.mxu0 %v981
    %1307 = vmatpush2.bf16.msra.mxu0 %v980
    %1308 = vmatprep.subr.bf16.mxu0 %v977
    %1309 = vmatpush2.bf16.msra.mxu0 %v976
    %1310 = vmatprep.subr.bf16.mxu0 %v973
    %1311 = vmatpush2.bf16.msra.mxu0 %v972
    %1312 = vmatprep.mubr.bf16.mxu0 %v401
    %1313 = vmatmul.mubr.bf16.gmra.mxu0 %v400
    %v1314 = vpop.f32.mrf.mxu0
    %v1315 = vadd.f32 %v545, %v1314
    %v1316 = vpop.f32.mrf.mxu0
    %v1317 = vadd.f32 %v549, %v1316
    %v1318 = vpop.f32.mrf.mxu0
    %v1319 = vadd.f32 %v545, %v1318
    %v1320 = vpop.f32.mrf.mxu0
    %v1321 = vadd.f32 %v549, %v1320
    %1322 = vdwg.mxu0
    %1323 = vmatprep.subr.bf16.mxu0 %v1033
    %1324 = vmatpush1.bf16.msra.mxu0 %v1032
    %1325 = vmatprep.subr.bf16.mxu0 %v1029
    %1326 = vmatpush1.bf16.msra.mxu0 %v1028
    %1327 = vmatprep.subr.bf16.mxu0 %v1025
    %1328 = vmatpush1.bf16.msra.mxu0 %v1024
    %1329 = vmatprep.subr.bf16.mxu0 %v1021
    %1330 = vmatpush1.bf16.msra.mxu0 %v1020
    %1331 = vmatprep.subr.bf16.mxu0 %v1017
    %1332 = vmatpush1.bf16.msra.mxu0 %v1016
    %1333 = vmatprep.subr.bf16.mxu0 %v1013
    %1334 = vmatpush1.bf16.msra.mxu0 %v1012
    %1335 = vmatprep.subr.bf16.mxu0 %v1009
    %1336 = vmatpush1.bf16.msra.mxu0 %v1008
    %1337 = vmatprep.subr.bf16.mxu0 %v1005
    %1338 = vmatpush1.bf16.msra.mxu0 %v1004
    %1339 = vmatprep.subr.bf16.mxu0 %v1065
    %1340 = vmatpush2.bf16.msra.mxu0 %v1064
    %1341 = vmatprep.subr.bf16.mxu0 %v1061
    %1342 = vmatpush2.bf16.msra.mxu0 %v1060
    %1343 = vmatprep.subr.bf16.mxu0 %v1057
    %1344 = vmatpush2.bf16.msra.mxu0 %v1056
    %1345 = vmatprep.subr.bf16.mxu0 %v1053
    %1346 = vmatpush2.bf16.msra.mxu0 %v1052
    %1347 = vmatprep.subr.bf16.mxu0 %v1049
    %1348 = vmatpush2.bf16.msra.mxu0 %v1048
    %1349 = vmatprep.subr.bf16.mxu0 %v1045
    %1350 = vmatpush2.bf16.msra.mxu0 %v1044
    %1351 = vmatprep.subr.bf16.mxu0 %v1041
    %1352 = vmatpush2.bf16.msra.mxu0 %v1040
    %1353 = vmatprep.subr.bf16.mxu0 %v1037
    %1354 = vmatpush2.bf16.msra.mxu0 %v1036
    %1355 = vmatprep.mubr.bf16.mxu0 %v403
    %1356 = vmatmul.mubr.bf16.gmra.mxu0 %v402
    %v1357 = vpop.f32.mrf.mxu0
    %v1358 = vadd.f32 %v1315, %v1357
    %v1359 = vpop.f32.mrf.mxu0
    %v1360 = vadd.f32 %v1317, %v1359
    %v1361 = vpop.f32.mrf.mxu0
    %v1362 = vadd.f32 %v1319, %v1361
    %v1363 = vpop.f32.mrf.mxu0
    %v1364 = vadd.f32 %v1321, %v1363
    %1365 = vdwg.mxu0
    %vm1366 = vcmp.ge.f32.partialorder %v1272, 0.0
    %vm1367 = vcmp.ge.f32.partialorder %v1274, 0.0
    %vm1368 = vcmp.ge.f32.partialorder %v1358, 0.0
    %vm1369 = vcmp.ge.f32.partialorder %v1360, 0.0
    %vm1370 = vcmp.ge.f32.partialorder %v1276, 0.0
    %vm1371 = vcmp.ge.f32.partialorder %v1278, 0.0
    %vm1372 = vcmp.ge.f32.partialorder %v1362, 0.0
    %vm1373 = vcmp.ge.f32.partialorder %v1364, 0.0
    %v1374 = vmul.f32 %v1272, 0.2
    %v1375 = vmul.f32 %v1274, 0.2
    %v1376 = vmul.f32 %v1358, 0.2
    %v1377 = vmul.f32 %v1360, 0.2
    %v1378 = vmul.f32 %v1276, 0.2
    %v1379 = vmul.f32 %v1278, 0.2
    %v1380 = vmul.f32 %v1362, 0.2
    %v1381 = vmul.f32 %v1364, 0.2
    %v1382 = vsel %vm1366, %v1272, %v1374
    %v1383 = vsel %vm1367, %v1274, %v1375
    %v1384 = vsel %vm1368, %v1358, %v1376
    %v1385 = vsel %vm1369, %v1360, %v1377
    %v1386 = vsel %vm1370, %v1276, %v1378
    %v1387 = vsel %vm1371, %v1278, %v1379
    %v1388 = vsel %vm1372, %v1362, %v1380
    %v1389 = vsel %vm1373, %v1364, %v1381
    %v1390 = vpack.c.bf16 %v1386, %v1382
    %v1391 = vpack.c.bf16 %v1387, %v1383
    %v1392 = vpack.c.bf16 %v1388, %v1384
    %v1393 = vpack.c.bf16 %v1389, %v1385
    %v1394 = vld [vmem:[#allocation6] sm:$0xf]
    %v1395 = vld [vmem:[#allocation6 + $0x4] sm:$0xf]
    %v1396 = vld [vmem:[#allocation6 + $0x8] sm:$0xf]
    %v1397 = vld [vmem:[#allocation6 + $0xc] sm:$0xf]
    %v1398 = vld [vmem:[#allocation6 + $0x10] sm:$0xf]
    %v1399 = vld [vmem:[#allocation6 + $0x14] sm:$0xf]
    %v1400 = vld [vmem:[#allocation6 + $0x18] sm:$0xf]
    %v1401 = vld [vmem:[#allocation6 + $0x1c] sm:$0xf]
    %v1402 = vld [vmem:[#allocation6 + $0x20] sm:$0xf]
    %v1403 = vld [vmem:[#allocation6 + $0x24] sm:$0xf]
    %v1404 = vld [vmem:[#allocation6 + $0x28] sm:$0xf]
    %v1405 = vld [vmem:[#allocation6 + $0x2c] sm:$0xf]
    %v1406 = vld [vmem:[#allocation6 + $0x30] sm:$0xf]
    %v1407 = vld [vmem:[#allocation6 + $0x34] sm:$0xf]
    %v1408 = vld [vmem:[#allocation6 + $0x38] sm:$0xf]
    %v1409 = vld [vmem:[#allocation6 + $0x3c] sm:$0xf]
    %v1410 = vld [vmem:[#allocation6 + $0x40] sm:$0xf]
    %v1411 = vld [vmem:[#allocation6 + $0x44] sm:$0xf]
    %v1412 = vld [vmem:[#allocation6 + $0x48] sm:$0xf]
    %v1413 = vld [vmem:[#allocation6 + $0x4c] sm:$0xf]
    %v1414 = vld [vmem:[#allocation6 + $0x50] sm:$0xf]
    %v1415 = vld [vmem:[#allocation6 + $0x54] sm:$0xf]
    %v1416 = vld [vmem:[#allocation6 + $0x58] sm:$0xf]
    %v1417 = vld [vmem:[#allocation6 + $0x5c] sm:$0xf]
    %v1418 = vld [vmem:[#allocation6 + $0x60] sm:$0xf]
    %v1419 = vld [vmem:[#allocation6 + $0x64] sm:$0xf]
    %v1420 = vld [vmem:[#allocation6 + $0x68] sm:$0xf]
    %v1421 = vld [vmem:[#allocation6 + $0x6c] sm:$0xf]
    %v1422 = vld [vmem:[#allocation6 + $0x70] sm:$0xf]
    %v1423 = vld [vmem:[#allocation6 + $0x74] sm:$0xf]
    %v1424 = vld [vmem:[#allocation6 + $0x78] sm:$0xf]
    %v1425 = vld [vmem:[#allocation6 + $0x7c] sm:$0xf]
    %v1426 = vld [vmem:[#allocation6 + $0x80] sm:$0xf]
    %v1427 = vld [vmem:[#allocation6 + $0x84] sm:$0xf]
    %v1428 = vld [vmem:[#allocation6 + $0x88] sm:$0xf]
    %v1429 = vld [vmem:[#allocation6 + $0x8c] sm:$0xf]
    %v1430 = vld [vmem:[#allocation6 + $0x90] sm:$0xf]
    %v1431 = vld [vmem:[#allocation6 + $0x94] sm:$0xf]
    %v1432 = vld [vmem:[#allocation6 + $0x98] sm:$0xf]
    %v1433 = vld [vmem:[#allocation6 + $0x9c] sm:$0xf]
    %v1434 = vld [vmem:[#allocation6 + $0xa0] sm:$0xf]
    %v1435 = vld [vmem:[#allocation6 + $0xa4] sm:$0xf]
    %v1436 = vld [vmem:[#allocation6 + $0xa8] sm:$0xf]
    %v1437 = vld [vmem:[#allocation6 + $0xac] sm:$0xf]
    %v1438 = vld [vmem:[#allocation6 + $0xb0] sm:$0xf]
    %v1439 = vld [vmem:[#allocation6 + $0xb4] sm:$0xf]
    %v1440 = vld [vmem:[#allocation6 + $0xb8] sm:$0xf]
    %v1441 = vld [vmem:[#allocation6 + $0xbc] sm:$0xf]
    %v1442 = vld [vmem:[#allocation6 + $0xc0] sm:$0xf]
    %v1443 = vld [vmem:[#allocation6 + $0xc4] sm:$0xf]
    %v1444 = vld [vmem:[#allocation6 + $0xc8] sm:$0xf]
    %v1445 = vld [vmem:[#allocation6 + $0xcc] sm:$0xf]
    %v1446 = vld [vmem:[#allocation6 + $0xd0] sm:$0xf]
    %v1447 = vld [vmem:[#allocation6 + $0xd4] sm:$0xf]
    %v1448 = vld [vmem:[#allocation6 + $0xd8] sm:$0xf]
    %v1449 = vld [vmem:[#allocation6 + $0xdc] sm:$0xf]
    %v1450 = vld [vmem:[#allocation6 + $0xe0] sm:$0xf]
    %v1451 = vld [vmem:[#allocation6 + $0xe4] sm:$0xf]
    %v1452 = vld [vmem:[#allocation6 + $0xe8] sm:$0xf]
    %v1453 = vld [vmem:[#allocation6 + $0xec] sm:$0xf]
    %v1454 = vld [vmem:[#allocation6 + $0xf0] sm:$0xf]
    %v1455 = vld [vmem:[#allocation6 + $0xf4] sm:$0xf]
    %v1456 = vld [vmem:[#allocation6 + $0xf8] sm:$0xf]
    %v1457 = vld [vmem:[#allocation6 + $0xfc] sm:$0xf]
    %v1458 = vld [vmem:[%s6] sm:$0x1]
    %v1460 = vlaneseq
    %v1461 = vshrl.u32 %v1460, 7
    %v1462 = vsub.s32 0, %v1461
    %v1463 = vrot.slane %v1458, %v1462
    %v1529 = vunpack.c.l.b16 %v1394
    %v1530 = vunpack.c.l.b16 %v1395
    %v1531 = vunpack.c.l.b16 %v1396
    %v1532 = vunpack.c.l.b16 %v1397
    %v1533 = vunpack.c.l.b16 %v1398
    %v1534 = vunpack.c.l.b16 %v1399
    %v1535 = vunpack.c.l.b16 %v1400
    %v1536 = vunpack.c.l.b16 %v1401
    %v1537 = vunpack.c.l.b16 %v1402
    %v1538 = vunpack.c.l.b16 %v1403
    %v1539 = vunpack.c.l.b16 %v1404
    %v1540 = vunpack.c.l.b16 %v1405
    %v1541 = vunpack.c.l.b16 %v1406
    %v1542 = vunpack.c.l.b16 %v1407
    %v1543 = vunpack.c.l.b16 %v1408
    %v1544 = vunpack.c.l.b16 %v1409
    %v1545 = vunpack.c.l.b16 %v1410
    %v1546 = vunpack.c.l.b16 %v1411
    %v1547 = vunpack.c.l.b16 %v1412
    %v1548 = vunpack.c.l.b16 %v1413
    %v1549 = vunpack.c.l.b16 %v1414
    %v1550 = vunpack.c.l.b16 %v1415
    %v1551 = vunpack.c.l.b16 %v1416
    %v1552 = vunpack.c.l.b16 %v1417
    %v1553 = vunpack.c.l.b16 %v1418
    %v1554 = vunpack.c.l.b16 %v1419
    %v1555 = vunpack.c.l.b16 %v1420
    %v1556 = vunpack.c.l.b16 %v1421
    %v1557 = vunpack.c.l.b16 %v1422
    %v1558 = vunpack.c.l.b16 %v1423
    %v1559 = vunpack.c.l.b16 %v1424
    %v1560 = vunpack.c.l.b16 %v1425
    %v1561 = vunpack.c.l.b16 %v1426
    %v1562 = vunpack.c.l.b16 %v1427
    %v1563 = vunpack.c.l.b16 %v1428
    %v1564 = vunpack.c.l.b16 %v1429
    %v1565 = vunpack.c.l.b16 %v1430
    %v1566 = vunpack.c.l.b16 %v1431
    %v1567 = vunpack.c.l.b16 %v1432
    %v1568 = vunpack.c.l.b16 %v1433
    %v1569 = vunpack.c.l.b16 %v1434
    %v1570 = vunpack.c.l.b16 %v1435
    %v1571 = vunpack.c.l.b16 %v1436
    %v1572 = vunpack.c.l.b16 %v1437
    %v1573 = vunpack.c.l.b16 %v1438
    %v1574 = vunpack.c.l.b16 %v1439
    %v1575 = vunpack.c.l.b16 %v1440
    %v1576 = vunpack.c.l.b16 %v1441
    %v1577 = vunpack.c.l.b16 %v1442
    %v1578 = vunpack.c.l.b16 %v1443
    %v1579 = vunpack.c.l.b16 %v1444
    %v1580 = vunpack.c.l.b16 %v1445
    %v1581 = vunpack.c.l.b16 %v1446
    %v1582 = vunpack.c.l.b16 %v1447
    %v1583 = vunpack.c.l.b16 %v1448
    %v1584 = vunpack.c.l.b16 %v1449
    %v1585 = vunpack.c.l.b16 %v1450
    %v1586 = vunpack.c.l.b16 %v1451
    %v1587 = vunpack.c.l.b16 %v1452
    %v1588 = vunpack.c.l.b16 %v1453
    %v1589 = vunpack.c.l.b16 %v1454
    %v1590 = vunpack.c.l.b16 %v1455
    %v1591 = vunpack.c.l.b16 %v1456
    %v1592 = vunpack.c.l.b16 %v1457
    %v1593 = vpack.c.b16 %v1530, %v1529
    %v1594 = vpack.c.b16 %v1532, %v1531
    %v1595 = vpack.c.b16 %v1534, %v1533
    %v1596 = vpack.c.b16 %v1536, %v1535
    %v1597 = vpack.c.b16 %v1538, %v1537
    %v1598 = vpack.c.b16 %v1540, %v1539
    %v1599 = vpack.c.b16 %v1542, %v1541
    %v1600 = vpack.c.b16 %v1544, %v1543
    %v1601 = vpack.c.b16 %v1546, %v1545
    %v1602 = vpack.c.b16 %v1548, %v1547
    %v1603 = vpack.c.b16 %v1550, %v1549
    %v1604 = vpack.c.b16 %v1552, %v1551
    %v1605 = vpack.c.b16 %v1554, %v1553
    %v1606 = vpack.c.b16 %v1556, %v1555
    %v1607 = vpack.c.b16 %v1558, %v1557
    %v1608 = vpack.c.b16 %v1560, %v1559
    %v1609 = vpack.c.b16 %v1562, %v1561
    %v1610 = vpack.c.b16 %v1564, %v1563
    %v1611 = vpack.c.b16 %v1566, %v1565
    %v1612 = vpack.c.b16 %v1568, %v1567
    %v1613 = vpack.c.b16 %v1570, %v1569
    %v1614 = vpack.c.b16 %v1572, %v1571
    %v1615 = vpack.c.b16 %v1574, %v1573
    %v1616 = vpack.c.b16 %v1576, %v1575
    %v1617 = vpack.c.b16 %v1578, %v1577
    %v1618 = vpack.c.b16 %v1580, %v1579
    %v1619 = vpack.c.b16 %v1582, %v1581
    %v1620 = vpack.c.b16 %v1584, %v1583
    %v1621 = vpack.c.b16 %v1586, %v1585
    %v1622 = vpack.c.b16 %v1588, %v1587
    %v1623 = vpack.c.b16 %v1590, %v1589
    %v1624 = vpack.c.b16 %v1592, %v1591
    %1657 = vmatprep.subr.bf16.mxu0 0
    %1658 = vmatpush1.bf16.msra.mxu0 %v1600
    %1659 = vmatprep.subr.bf16.mxu0 0
    %1660 = vmatpush1.bf16.msra.mxu0 %v1599
    %1661 = vmatprep.subr.bf16.mxu0 0
    %1662 = vmatpush1.bf16.msra.mxu0 %v1598
    %1663 = vmatprep.subr.bf16.mxu0 0
    %1664 = vmatpush1.bf16.msra.mxu0 %v1597
    %1665 = vmatprep.subr.bf16.mxu0 0
    %1666 = vmatpush1.bf16.msra.mxu0 %v1596
    %1667 = vmatprep.subr.bf16.mxu0 0
    %1668 = vmatpush1.bf16.msra.mxu0 %v1595
    %1669 = vmatprep.subr.bf16.mxu0 0
    %1670 = vmatpush1.bf16.msra.mxu0 %v1594
    %1671 = vmatprep.subr.bf16.mxu0 0
    %1672 = vmatpush1.bf16.msra.mxu0 %v1593
    %1673 = vmatprep.subr.bf16.mxu0 0
    %1674 = vmatpush2.bf16.msra.mxu0 %v1608
    %1675 = vmatprep.subr.bf16.mxu0 0
    %1676 = vmatpush2.bf16.msra.mxu0 %v1607
    %1677 = vmatprep.subr.bf16.mxu0 0
    %1678 = vmatpush2.bf16.msra.mxu0 %v1606
    %1679 = vmatprep.subr.bf16.mxu0 0
    %1680 = vmatpush2.bf16.msra.mxu0 %v1605
    %1681 = vmatprep.subr.bf16.mxu0 0
    %1682 = vmatpush2.bf16.msra.mxu0 %v1604
    %1683 = vmatprep.subr.bf16.mxu0 0
    %1684 = vmatpush2.bf16.msra.mxu0 %v1603
    %1685 = vmatprep.subr.bf16.mxu0 0
    %1686 = vmatpush2.bf16.msra.mxu0 %v1602
    %1687 = vmatprep.subr.bf16.mxu0 0
    %1688 = vmatpush2.bf16.msra.mxu0 %v1601
    %1689 = vmatprep.mubr.bf16.mxu0 %v1391
    %1690 = vmatmul.mubr.bf16.gmra.mxu0 %v1390
    %v1691 = vpop.f32.mrf.mxu0
    %v1692 = vadd.f32 %v1463, %v1691
    %v1693 = vpop.f32.mrf.mxu0
    %v1694 = vpop.f32.mrf.mxu0
    %v1695 = vadd.f32 %v1463, %v1694
    %v1696 = vpop.f32.mrf.mxu0
    %1697 = vdwg.mxu0
    %1698 = vmatprep.subr.bf16.mxu0 0
    %1699 = vmatpush1.bf16.msra.mxu0 %v1616
    %1700 = vmatprep.subr.bf16.mxu0 0
    %1701 = vmatpush1.bf16.msra.mxu0 %v1615
    %1702 = vmatprep.subr.bf16.mxu0 0
    %1703 = vmatpush1.bf16.msra.mxu0 %v1614
    %1704 = vmatprep.subr.bf16.mxu0 0
    %1705 = vmatpush1.bf16.msra.mxu0 %v1613
    %1706 = vmatprep.subr.bf16.mxu0 0
    %1707 = vmatpush1.bf16.msra.mxu0 %v1612
    %1708 = vmatprep.subr.bf16.mxu0 0
    %1709 = vmatpush1.bf16.msra.mxu0 %v1611
    %1710 = vmatprep.subr.bf16.mxu0 0
    %1711 = vmatpush1.bf16.msra.mxu0 %v1610
    %1712 = vmatprep.subr.bf16.mxu0 0
    %1713 = vmatpush1.bf16.msra.mxu0 %v1609
    %1714 = vmatprep.subr.bf16.mxu0 0
    %1715 = vmatpush2.bf16.msra.mxu0 %v1624
    %1716 = vmatprep.subr.bf16.mxu0 0
    %1717 = vmatpush2.bf16.msra.mxu0 %v1623
    %1718 = vmatprep.subr.bf16.mxu0 0
    %1719 = vmatpush2.bf16.msra.mxu0 %v1622
    %1720 = vmatprep.subr.bf16.mxu0 0
    %1721 = vmatpush2.bf16.msra.mxu0 %v1621
    %1722 = vmatprep.subr.bf16.mxu0 0
    %1723 = vmatpush2.bf16.msra.mxu0 %v1620
    %1724 = vmatprep.subr.bf16.mxu0 0
    %1725 = vmatpush2.bf16.msra.mxu0 %v1619
    %1726 = vmatprep.subr.bf16.mxu0 0
    %1727 = vmatpush2.bf16.msra.mxu0 %v1618
    %1728 = vmatprep.subr.bf16.mxu0 0
    %1729 = vmatpush2.bf16.msra.mxu0 %v1617
    %1730 = vmatprep.mubr.bf16.mxu0 %v1393
    %1731 = vmatmul.mubr.bf16.gmra.mxu0 %v1392
    %v1732 = vpop.f32.mrf.mxu0
    %v1733 = vadd.f32 %v1692, %v1732
    %v1734 = vpop.f32.mrf.mxu0
    %v1735 = vpop.f32.mrf.mxu0
    %v1736 = vadd.f32 %v1695, %v1735
    %v1737 = vpop.f32.mrf.mxu0
    %1738 = vdwg.mxu0
    %1739 = vst [vmem:[%s7] sm:$0xff] %v1733
    %1740 = vst [vmem:[%s7 + $0x8] sm:$0xff] %v1736
    // Predicated region
    $region42: #{vposer_forward.1} parent=1 // pred_check
      _
    $region43: #{vposer_forward.1} parent=1 // pred_check_branch
      %1742 = sbr.rel (0) target = $region45
    $region44: #{vposer_forward.1} parent=1 // pred_region
      _
    $region45: #{vposer_forward.1} parent=1 // pred_fallthru
      _
    // Predicated region
    $region46: #{vposer_forward.1} parent=1 // pred_check
      _
    $region47: #{vposer_forward.1} parent=1 // pred_check_branch
      %1744 = sbr.rel (0) target = $region49
    $region48: #{vposer_forward.1} parent=1 // pred_region
      _
    $region49: #{vposer_forward.1} parent=1 // pred_fallthru
      _
    %1745 = vsyncpa [#allocation3], 1
    %1746 = vsyncpa [#allocation5], 1

</llo_original>
